<compile_context>
chip_gen: v5e
topology: v5e:2x2
jax: 0.10.0
libtpu: 0.0.40
codegen_flags: <defaults>
</compile_context>

<pallas_src>
import functools

import numpy as np
import jax
import jax.numpy as jnp
from jax.experimental import pallas as pl
from jax.experimental.pallas import tpu as pltpu

NEG_SLOPE = 0.01   # F.leaky_relu default
F_IN = 256         # GCNConv in dim (hard-coded 256 in the module)
F_MID = 512        # GCNConv out dim == 128 * heads
H_PAD = 128        # padded fc_output width (real hidden_feature_dim sliced in glue)


def _leaky(v):
    return jnp.where(v > 0, v, NEG_SLOPE * v)


# --------------------------------------------------------------------------- #
# Kernels
# --------------------------------------------------------------------------- #
def _fused_kernel(adj_ref, x_ref, w1_ref, b1_ref, w2_ref, b2_ref, out_ref):
    """1-D grid over row stripes; full reduction (all Â columns) in one step."""
    # Reassociated GCN matmul: (Â X) first (inner width F_IN), then @ W1.
    ax = jnp.dot(adj_ref[...], x_ref[...], preferred_element_type=jnp.float32)
    h = _leaky(jnp.dot(ax.astype(jnp.bfloat16), w1_ref[...],
                       preferred_element_type=jnp.float32) + b1_ref[...])
    z = jnp.dot(h.astype(jnp.bfloat16), w2_ref[...],
                preferred_element_type=jnp.float32) + b2_ref[...]
    # NOTE: padded (all-zero) Â rows still yield leaky(leaky(b1)W2 + b2) here; the
    # glue only gathers real diagonal-node rows, so that garbage is never consumed.
    out_ref[...] = _leaky(z).astype(out_ref.dtype)


def _tiled_kernel(adj_ref, x_ref, w1_ref, b1_ref, w2_ref, b2_ref, out_ref,
                  acc_ref, *, tk):
    """2-D grid (row tiles x reduction tiles); X stays VMEM-resident."""
    k = pl.program_id(1)

    @pl.when(k == 0)
    def _():
        acc_ref[...] = jnp.zeros_like(acc_ref)

    # Accumulate (Â X) at inner width F_IN; slice the resident X in-kernel.
    x_blk = x_ref[pl.ds(pl.multiple_of(k * tk, tk), tk), :]
    acc_ref[...] += jnp.dot(adj_ref[...], x_blk,
                            preferred_element_type=jnp.float32)

    @pl.when(k == pl.num_programs(1) - 1)
    def _():
        # Finalize: (Â X) W1 + b1, leaky, then fc_output (128-lane padded), leaky.
        ax = acc_ref[...].astype(jnp.bfloat16)
        h = _leaky(jnp.dot(ax, w1_ref[...],
                           preferred_element_type=jnp.float32) + b1_ref[...])
        z = jnp.dot(h.astype(jnp.bfloat16), w2_ref[...],
                    preferred_element_type=jnp.float32) + b2_ref[...]
        out_ref[...] = _leaky(z).astype(out_ref.dtype)


# --------------------------------------------------------------------------- #
# Wrapper / tiling policy
# --------------------------------------------------------------------------- #
def _vmem_limit_bytes():
    """Scoped VMEM request: physical minus headroom (v7x has only 64 MiB/TC)."""
    try:
        phys = int(pltpu.get_tpu_info().vmem_capacity_bytes)
    except Exception:
        phys = 64 * 1024 * 1024   # conservative default: v7x per-TC capacity
    return int(max(32 * 1024 * 1024,
                   min(phys - 16 * 1024 * 1024, 64 * 1024 * 1024)))


def _pick_tm(n_pad):
    """Biggest row tile that still leaves >=2 row tiles (v7x dual-TC split)."""
    for tm in (512, 256, 128):
        if n_pad % tm == 0 and n_pad // tm >= 2:
            return tm
    return min(n_pad, 128)


def _fused_footprint_bytes(n_pad, tm):
    adj = 2 * tm * n_pad * 2                      # double-buffered bf16 Â stripe
    x = 2 * n_pad * F_IN * 2                      # resident X (still 2-buffered)
    w = 2 * (F_IN * F_MID + F_MID * H_PAD) * 2    # W1, W2 (bf16)
    b = 2 * (F_MID + H_PAD) * 4
    out = 2 * tm * H_PAD * 2                      # bf16 output tile
    tmp = tm * (F_IN + F_MID + H_PAD) * 4         # in-kernel f32 intermediates
    return adj + x + w + b + out + tmp


def dec_gnn_encoder_pallas(adj_hat, x, w1, b1, w2, b2, *, tm=None, tk=None,
                           force_tiled=False):
    n_pad = adj_hat.shape[0]
    assert adj_hat.shape == (n_pad, n_pad) and n_pad % 128 == 0
    assert x.shape == (n_pad, F_IN) and w1.shape == (F_IN, F_MID)
    h_real = w2.shape[1]
    assert w2.shape[0] == F_MID and h_real <= H_PAD

    # bf16 operands at the call boundary; f32 accumulation inside; biases stay f32.
    adj_bf = adj_hat.astype(jnp.bfloat16)
    x_bf = x.astype(jnp.bfloat16)
    w1_bf = w1.astype(jnp.bfloat16)
    # Pad fc_output to 128 lanes (zero cols/bias -> padded outputs are leaky(0)=0).
    w2p_bf = (jnp.zeros((F_MID, H_PAD), jnp.float32)
              .at[:, :h_real].set(w2).astype(jnp.bfloat16))
    b1f = jnp.asarray(b1, jnp.float32).reshape(1, F_MID)
    b2p = (jnp.zeros((1, H_PAD), jnp.float32)
           .at[:, :h_real].set(jnp.asarray(b2, jnp.float32).reshape(1, -1)))

    vmem_limit = _vmem_limit_bytes()
    if tm is None:
        tm = _pick_tm(n_pad)
    assert n_pad % tm == 0

    flops = (2 * n_pad * n_pad * F_IN          # Â X
             + 2 * n_pad * F_IN * F_MID        # (ÂX) W1
             + 2 * n_pad * F_MID * H_PAD)      # H W2
    bytes_accessed = (adj_bf.size * 2 + x_bf.size * 2 + w1_bf.size * 2
                      + w2p_bf.size * 2 + b1f.size * 4 + b2p.size * 4
                      + n_pad * H_PAD * 2)     # X resident -> counted once
    cost = pl.CostEstimate(flops=int(flops), transcendentals=0,
                           bytes_accessed=int(bytes_accessed))
    out_shape = jax.ShapeDtypeStruct((n_pad, H_PAD), jnp.bfloat16)

    use_fused = (not force_tiled
                 and _fused_footprint_bytes(n_pad, tm) <= int(0.6 * vmem_limit))

    if use_fused:
        grid_spec = pltpu.PrefetchScalarGridSpec(
            num_scalar_prefetch=0,
            grid=(n_pad // tm,),
            in_specs=[
                pl.BlockSpec((tm, n_pad), lambda i: (i, 0)),       # Â row stripe
                pl.BlockSpec((n_pad, F_IN), lambda i: (0, 0)),     # X (resident)
                pl.BlockSpec((F_IN, F_MID), lambda i: (0, 0)),     # W1
                pl.BlockSpec((1, F_MID), lambda i: (0, 0)),        # b1
                pl.BlockSpec((F_MID, H_PAD), lambda i: (0, 0)),    # W2 (padded)
                pl.BlockSpec((1, H_PAD), lambda i: (0, 0)),        # b2 (padded)
            ],
            out_specs=pl.BlockSpec((tm, H_PAD), lambda i: (i, 0)),
        )
        kernel = _fused_kernel
        dim_sem = ("parallel",)
    else:
        if tk is None:
            tk = 256 if n_pad % 256 == 0 else 128   # full-depth K on v6e/v7x MXU
        assert n_pad % tk == 0
        grid_spec = pltpu.PrefetchScalarGridSpec(
            num_scalar_prefetch=0,
            grid=(n_pad // tm, n_pad // tk),
            in_specs=[
                pl.BlockSpec((tm, tk), lambda i, k: (i, k)),         # Â tile
                pl.BlockSpec((n_pad, F_IN), lambda i, k: (0, 0)),    # X (resident)
                pl.BlockSpec((F_IN, F_MID), lambda i, k: (0, 0)),    # W1
                pl.BlockSpec((1, F_MID), lambda i, k: (0, 0)),       # b1
                pl.BlockSpec((F_MID, H_PAD), lambda i, k: (0, 0)),   # W2 (padded)
                pl.BlockSpec((1, H_PAD), lambda i, k: (0, 0)),       # b2 (padded)
            ],
            out_specs=pl.BlockSpec((tm, H_PAD), lambda i, k: (i, 0)),
            scratch_shapes=[pltpu.VMEM((tm, F_IN), jnp.float32)],    # (Â X) acc
        )
        kernel = functools.partial(_tiled_kernel, tk=tk)
        dim_sem = ("parallel", "arbitrary")

    return pl.pallas_call(
        kernel,
        out_shape=out_shape,
        grid_spec=grid_spec,
        compiler_params=pltpu.CompilerParams(
            dimension_semantics=dim_sem,
            vmem_limit_bytes=vmem_limit,
        ),
        cost_estimate=cost,
    )(adj_bf, x_bf, w1_bf, b1f, w2p_bf, b2p)


# --------------------------------------------------------------------------- #
# Graph construction (module's expectations) + references
# --------------------------------------------------------------------------- #
def build_graph(num_agent_record):
    """Each env i contributes n_i**2 nodes, fully connected within the env.
    Returns the GCN-normalized dense adjacency Â and the diagonal output ids."""
    n_nodes = int(sum(n * n for n in num_agent_record))
    a = np.zeros((n_nodes, n_nodes), np.float32)
    off = 0
    for n in num_agent_record:
        m = n * n
        a[off:off + m, off:off + m] = 1.0   # diagonal plays the added-self-loop role
        off += m
    deg = a.sum(axis=1)
    d_inv_sqrt = 1.0 / np.sqrt(np.maximum(deg, 1.0))
    a_hat = a * d_inv_sqrt[:, None] * d_inv_sqrt[None, :]

    output_id = []
    s = 0
    for n in num_agent_record:
        for j in range(n):
            output_id.append(s + n * j + j)
        s += n * n
    return a_hat, np.asarray(output_id, np.int32), n_nodes


def reference_jax_bf16(adj_hat, x, w1, b1, w2, b2):
    """Matches the kernel's mixed precision (bf16 operands, f32 accumulation)."""
    ax = jnp.dot(adj_hat.astype(jnp.bfloat16), x.astype(jnp.bfloat16),
                 preferred_element_type=jnp.float32)
    h = _leaky(jnp.dot(ax.astype(jnp.bfloat16), w1.astype(jnp.bfloat16),
                       preferred_element_type=jnp.float32) + b1)
    z = _leaky(jnp.dot(h.astype(jnp.bfloat16), w2.astype(jnp.bfloat16),
                       preferred_element_type=jnp.float32) + b2)
    return z


def reference_jax_f32(adj_hat, x, w1, b1, w2, b2):
    h = _leaky(adj_hat @ (x @ w1) + b1)
    return _leaky(h @ w2 + b2)


# --------------------------------------------------------------------------- #
if __name__ == "__main__":
    node_feature_dim = F_IN
    hidden_feature_dim = 32

    # 4+9+16+25+36+49 = 139 nodes, 27 diagonal nodes
    num_agent_record = [2, 3, 4, 5, 6, 7]
    a_hat_np, output_id_np, n_nodes = build_graph(num_agent_record)

    n_pad = ((n_nodes + 127) // 128) * 128      # -> 256
    a_hat_pad = np.zeros((n_pad, n_pad), np.float32)
    a_hat_pad[:n_nodes, :n_nodes] = a_hat_np

    key = jax.random.PRNGKey(0)
    k_x, k_w1, k_b1, k_w2, k_b2 = jax.random.split(key, 5)

    x_nodes = jax.random.normal(k_x, (n_nodes, node_feature_dim), jnp.float32)
    x_pad = jnp.zeros((n_pad, node_feature_dim), jnp.float32).at[:n_nodes].set(x_nodes)

    w1 = jax.random.normal(k_w1, (node_feature_dim, F_MID), jnp.float32) * 0.05
    b1 = jax.random.normal(k_b1, (1, F_MID), jnp.float32) * 0.05
    w2 = jax.random.normal(k_w2, (F_MID, hidden_feature_dim), jnp.float32) * 0.05
    b2 = jax.random.normal(k_b2, (1, hidden_feature_dim), jnp.float32) * 0.05

    adj_hat = jnp.asarray(a_hat_pad)
    ids = jnp.asarray(output_id_np)

    ref_bf = reference_jax_bf16(adj_hat, x_pad, w1, b1, w2, b2)[ids]
    ref_f32 = reference_jax_f32(adj_hat, x_pad, w1, b1, w2, b2)[ids]

    # Path 1: fused 1-D grid (auto-selected for this size).
    out_fused = jax.block_until_ready(
        dec_gnn_encoder_pallas(adj_hat, x_pad, w1, b1, w2, b2))
    sel_fused = out_fused[ids, :hidden_feature_dim].astype(jnp.float32)

    # Path 2: tiled 2-D accumulator grid (forced; exercises the large-graph path).
    out_tiled = jax.block_until_ready(
        dec_gnn_encoder_pallas(adj_hat, x_pad, w1, b1, w2, b2,
                               tm=128, tk=128, force_tiled=True))
    sel_tiled = out_tiled[ids, :hidden_feature_dim].astype(jnp.float32)

    for sel in (sel_fused, sel_tiled):
        assert sel.shape == (len(output_id_np), hidden_feature_dim)
        np.testing.assert_allclose(np.asarray(sel), np.asarray(ref_bf),
                                   rtol=2e-2, atol=2e-2)
        np.testing.assert_allclose(np.asarray(sel), np.asarray(ref_f32),
                                   rtol=1e-1, atol=1e-1)

    print("KERNEL_OK")
</pallas_src>

<mosaic_0001>
module attributes {stable_mosaic.version = 11 : i64} {
  func.func @_fused_kernel(%arg0: i32, %arg1: memref<128x256xbf16, #tpu.memory_space<vmem>>, %arg2: memref<256x256xbf16, #tpu.memory_space<vmem>>, %arg3: memref<256x512xbf16, #tpu.memory_space<vmem>>, %arg4: memref<1x512xf32, #tpu.memory_space<vmem>>, %arg5: memref<512x128xbf16, #tpu.memory_space<vmem>>, %arg6: memref<1x128xf32, #tpu.memory_space<vmem>>, %arg7: memref<128x128xbf16, #tpu.memory_space<vmem>>) attributes {dimension_semantics = [#tpu.dimension_semantics<parallel>], iteration_bounds = array<i64: 2>, scalar_prefetch = 0 : i64, scratch_operands = 0 : i64, tpu.core_type = #tpu.core_type<tc>, window_params = [{transform_indices = @transform_0, window_bounds = array<i64: 128, 256>}, {pipeline_mode = #tpu.pipeline_mode<synchronous>, transform_indices = @transform_1, window_bounds = array<i64: 256, 256>}, {pipeline_mode = #tpu.pipeline_mode<synchronous>, transform_indices = @transform_2, window_bounds = array<i64: 256, 512>}, {pipeline_mode = #tpu.pipeline_mode<synchronous>, transform_indices = @transform_3, window_bounds = array<i64: 1, 512>}, {pipeline_mode = #tpu.pipeline_mode<synchronous>, transform_indices = @transform_4, window_bounds = array<i64: 512, 128>}, {pipeline_mode = #tpu.pipeline_mode<synchronous>, transform_indices = @transform_5, window_bounds = array<i64: 1, 128>}, {transform_indices = @transform_6, window_bounds = array<i64: 128, 128>}]} {
    %c0 = arith.constant 0 : index
    %c0_0 = arith.constant 0 : index
    %0 = vector.load %arg1[%c0, %c0_0] : memref<128x256xbf16, #tpu.memory_space<vmem>>, vector<128x256xbf16>
    %c0_1 = arith.constant 0 : index
    %c0_2 = arith.constant 0 : index
    %1 = vector.load %arg2[%c0_1, %c0_2] : memref<256x256xbf16, #tpu.memory_space<vmem>>, vector<256x256xbf16>
    %cst = arith.constant dense<0.000000e+00> : vector<128x256xf32>
    %2 = tpu.matmul %0, %1, %cst {dimension_numbers = #tpu.dot_dimension_numbers<[1], [0], [0], [1], [0, 0, 1, 1], [], []>} : vector<128x256xbf16>, vector<256x256xbf16>, vector<128x256xf32> -> vector<128x256xf32>
    %3 = arith.truncf %2 : vector<128x256xf32> to vector<128x256xbf16>
    %c0_3 = arith.constant 0 : index
    %c0_4 = arith.constant 0 : index
    %4 = vector.load %arg3[%c0_3, %c0_4] : memref<256x512xbf16, #tpu.memory_space<vmem>>, vector<256x512xbf16>
    %cst_5 = arith.constant dense<0.000000e+00> : vector<128x512xf32>
    %5 = tpu.matmul %3, %4, %cst_5 {dimension_numbers = #tpu.dot_dimension_numbers<[1], [0], [0], [1], [0, 0, 1, 1], [], []>} : vector<128x256xbf16>, vector<256x512xbf16>, vector<128x512xf32> -> vector<128x512xf32>
    %c0_6 = arith.constant 0 : index
    %c0_7 = arith.constant 0 : index
    %6 = vector.load %arg4[%c0_6, %c0_7] : memref<1x512xf32, #tpu.memory_space<vmem>>, vector<1x512xf32>
    %7 = vector.broadcast %6 : vector<1x512xf32> to vector<128x512xf32>
    %8 = arith.addf %5, %7 : vector<128x512xf32>
    %cst_8 = arith.constant 0.000000e+00 : f32
    %9 = vector.broadcast %cst_8 : f32 to vector<128x512xf32>
    %10 = arith.cmpf ogt, %8, %9 : vector<128x512xf32>
    %cst_9 = arith.constant 0.00999999977 : f32
    %11 = vector.broadcast %cst_9 : f32 to vector<128x512xf32>
    %12 = arith.mulf %11, %8 : vector<128x512xf32>
    %13 = arith.select %10, %8, %12 : vector<128x512xi1>, vector<128x512xf32>
    %14 = arith.truncf %13 : vector<128x512xf32> to vector<128x512xbf16>
    %c0_10 = arith.constant 0 : index
    %c0_11 = arith.constant 0 : index
    %15 = vector.load %arg5[%c0_10, %c0_11] : memref<512x128xbf16, #tpu.memory_space<vmem>>, vector<512x128xbf16>
    %cst_12 = arith.constant dense<0.000000e+00> : vector<128x128xf32>
    %16 = tpu.matmul %14, %15, %cst_12 {dimension_numbers = #tpu.dot_dimension_numbers<[1], [0], [0], [1], [0, 0, 1, 1], [], []>} : vector<128x512xbf16>, vector<512x128xbf16>, vector<128x128xf32> -> vector<128x128xf32>
    %c0_13 = arith.constant 0 : index
    %c0_14 = arith.constant 0 : index
    %17 = vector.load %arg6[%c0_13, %c0_14] : memref<1x128xf32, #tpu.memory_space<vmem>>, vector<1x128xf32>
    %18 = vector.broadcast %17 : vector<1x128xf32> to vector<128x128xf32>
    %19 = arith.addf %16, %18 : vector<128x128xf32>
    %cst_15 = arith.constant 0.000000e+00 : f32
    %20 = vector.broadcast %cst_15 : f32 to vector<128x128xf32>
    %21 = arith.cmpf ogt, %19, %20 : vector<128x128xf32>
    %cst_16 = arith.constant 0.00999999977 : f32
    %22 = vector.broadcast %cst_16 : f32 to vector<128x128xf32>
    %23 = arith.mulf %22, %19 : vector<128x128xf32>
    %24 = arith.select %21, %19, %23 : vector<128x128xi1>, vector<128x128xf32>
    %25 = arith.truncf %24 : vector<128x128xf32> to vector<128x128xbf16>
    %c0_17 = arith.constant 0 : index
    %c0_18 = arith.constant 0 : index
    %26 = vector.load %arg7[%c0_17, %c0_18] : memref<128x128xbf16, #tpu.memory_space<vmem>>, vector<128x128xbf16>
    tpu.vector_store %arg7[%c0_17, %c0_18], %25 {strides = array<i32>} : memref<128x128xbf16, #tpu.memory_space<vmem>>, vector<128x128xbf16>,
    return
  }
  func.func @transform_0(%arg0: i32) -> (i32, i32) {
    %c0_i32 = arith.constant 0 : i32
    %c0_i32_0 = arith.constant 0 : i32
    return %arg0, %c0_i32 : i32, i32
  }
  func.func @transform_1(%arg0: i32) -> (i32, i32) {
    %c0_i32 = arith.constant 0 : i32
    %c0_i32_0 = arith.constant 0 : i32
    %c0_i32_1 = arith.constant 0 : i32
    return %c0_i32, %c0_i32_0 : i32, i32
  }
  func.func @transform_2(%arg0: i32) -> (i32, i32) {
    %c0_i32 = arith.constant 0 : i32
    %c0_i32_0 = arith.constant 0 : i32
    %c0_i32_1 = arith.constant 0 : i32
    return %c0_i32, %c0_i32_0 : i32, i32
  }
  func.func @transform_3(%arg0: i32) -> (i32, i32) {
    %c0_i32 = arith.constant 0 : i32
    %c0_i32_0 = arith.constant 0 : i32
    %c0_i32_1 = arith.constant 0 : i32
    return %c0_i32, %c0_i32_0 : i32, i32
  }
  func.func @transform_4(%arg0: i32) -> (i32, i32) {
    %c0_i32 = arith.constant 0 : i32
    %c0_i32_0 = arith.constant 0 : i32
    %c0_i32_1 = arith.constant 0 : i32
    return %c0_i32, %c0_i32_0 : i32, i32
  }
  func.func @transform_5(%arg0: i32) -> (i32, i32) {
    %c0_i32 = arith.constant 0 : i32
    %c0_i32_0 = arith.constant 0 : i32
    %c0_i32_1 = arith.constant 0 : i32
    return %c0_i32, %c0_i32_0 : i32, i32
  }
  func.func @transform_6(%arg0: i32) -> (i32, i32) {
    %c0_i32 = arith.constant 0 : i32
    %c0_i32_0 = arith.constant 0 : i32
    return %arg0, %c0_i32 : i32, i32
  }
}

</mosaic_0001>

<llo_original>
// kernel: tpu_custom_call.1
$region0: #{tpu_custom_call.1}
  #allocation0 [shape = 'u32[]', space=smem, size = 0x4, offset = 0x4, fixed_abs, tag = 'smem constant byte address 0x4 - core index']
  #allocation1 [shape = 'u32[72,128]{1,0:T(1,128)}', space=vmem, size = 0x9000, scoped, tag = 'internal scratch']
  %s0 = inlined_call_operand.hbm [shape: bf16[256,256], index: 0, kind: input, shape index: {}]
  %s1 = inlined_call_operand.hbm [shape: bf16[256,256], index: 1, kind: input, shape index: {}]
  %s2 = inlined_call_operand.hbm [shape: bf16[256,512], index: 2, kind: input, shape index: {}]
  %s3 = inlined_call_operand.hbm [shape: f32[1,512], index: 3, kind: input, shape index: {}]
  %s4 = inlined_call_operand.hbm [shape: bf16[512,128], index: 4, kind: input, shape index: {}]
  %s5 = inlined_call_operand.vmem [shape: f32[1,128], index: 5, kind: input, shape index: {}]
  %s6 = inlined_call_operand.hbm [shape: bf16[256,128], index: 6, kind: output, shape index: {}]
  %s7 = sld [smem:[#allocation0]]
  $region77: #{tpu_custom_call.1} parent=0
    _
  %s9 = ssub.s32 1, %s7
  %s10 = scalar_select 0, %s9, %s7
  $region1: #{tpu_custom_call.1} parent=0
    #allocation2 [shape = 'u8[131072]{0}', space=vmem, size = 0x20000, scoped, tag = 'input window, operand 0']
    #allocation3 [shape = 's32[2]{0}', space=sflag, size = 0x8, scoped, tag = 'scoped memory for tpu_custom_call.1']
    #allocation4 [shape = 's32[2]{0}', space=sflag, size = 0x8, scoped, tag = 'scoped memory for tpu_custom_call.1']
    #allocation5 [shape = 'u8[131072]{0}', space=vmem, size = 0x20000, scoped, tag = 'input window, operand 1, single buffered']
    #allocation6 [shape = 's32[1]{0}', space=sflag, size = 0x4, scoped, tag = 'scoped memory for tpu_custom_call.1']
    #allocation7 [shape = 'u8[262144]{0}', space=vmem, size = 0x40000, scoped, tag = 'input window, operand 2, single buffered']
    #allocation8 [shape = 'u8[2048]{0}', space=vmem, size = 0x800, scoped, tag = 'input window, operand 3, single buffered']
    #allocation9 [shape = 's32[1]{0}', space=sflag, size = 0x4, scoped, tag = 'scoped memory for tpu_custom_call.1']
    #allocation10 [shape = 'u8[131072]{0}', space=vmem, size = 0x20000, scoped, tag = 'input window, operand 4, single buffered']
    #allocation11 [shape = 'u8[65536]{0}', space=vmem, size = 0x10000, scoped, tag = 'output window, operand 0']
    %11 = vsyncpa [#allocation3], 0
    %s12 = scalar_lea.sflag [#allocation3], 1
    %13 = vsyncpa %s12, 0
    %14 = vsyncpa [#allocation6], 0
    %15 = vsyncpa [#allocation9], 0
    %16 = vsyncpa [#allocation4], 0
    %s17 = scalar_lea.sflag [#allocation4], 1
    %18 = vsyncpa %s17, 0
    loop: start=0, step=1, limit=4
    $region2: #{tpu_custom_call.1} parent=1 // loop_pre_header
      _
    $region3: #{tpu_custom_call.1} parent=1 // loop_header
      %s20 = sphi 0, %s24
      %p21 = scmp.ge.s32.totalorder %s20, 4
      %s30 = sphi 0, %s32
      %s33 = sphi 0, %s30
      %s34 = sphi 0, %s33
      %s50 = sphi 0, %s34
      %s54 = sphi 0, %s54
      %s56 = sphi 0, %s54
      %s57 = sphi 0, %s56
      %s71 = sphi 0, %s57
      %s75 = sphi 0, %s75
      %s77 = sphi 0, %s75
      %s78 = sphi 0, %s77
      %s92 = sphi 0, %s78
      %s96 = sphi 0, %s96
      %s98 = sphi 0, %s96
      %s99 = sphi 0, %s98
      %s113 = sphi 0, %s99
      %s117 = sphi 0, %s117
      %s119 = sphi 0, %s117
      %s120 = sphi 0, %s119
      %s134 = sphi 0, %s120
      %s138 = sphi 0, %s138
      %s140 = sphi 0, %s138
      %s141 = sphi 0, %s140
      %s155 = sphi 0, %s141
      %s161 = sphi 0, %s163
      %s164 = sphi 0, %s161
      %s165 = sphi 0, %s164
      %s181 = sphi 0, %s165
    $region4: #{tpu_custom_call.1} parent=1 // loop_header_branch
      %23 = sbr.rel (%p21) target = $region8
    $region5: #{tpu_custom_call.1} parent=1 // loop_body
      %s25 = ssub.s32 %s20, 1
      %s26 = ssub.s32 %s20, 2
      %s27 = sadd.s32 %s20, 1
      %s28 = ssub.s32 %s20, %s27
      %p29 = scmp.eq.s32.totalorder %s28, 0
      %s31 = sadd.s32 %s30, 1
      %s32 = scalar_select %p29, %s30, %s31
      %p35 = pneg %p29
      %p36 = scmp.eq.s32.totalorder %s20, 1
      %p37 = por %p35, %p36
      %p38 = scmp.ne.s32.totalorder %s30, %s33
      %p39 = scmp.eq.s32.totalorder %s20, 0
      %p40 = por %p38, %p39
      %p41 = scmp.ne.s32.totalorder %s30, %s33
      %p42 = scmp.eq.s32.totalorder %s25, 1
      %p43 = por %p41, %p42
      %p44 = scmp.ne.s32.totalorder %s33, %s34
      %p45 = scmp.eq.s32.totalorder %s25, 0
      %p46 = por %p44, %p45
      %p47 = scmp.ne.s32.totalorder %s33, %s34
      %p48 = scmp.eq.s32.totalorder %s26, 1
      %p49 = por %p47, %p48
      %p51 = scmp.ne.s32.totalorder %s34, %s50
      %p52 = scmp.eq.s32.totalorder %s26, 0
      %p53 = por %p51, %p52
      %s55 = sadd.s32 %s54, 1
      %p58 = scmp.eq.s32.totalorder %s20, 1
      %p59 = scmp.ne.s32.totalorder %s54, %s56
      %p60 = scmp.eq.s32.totalorder %s20, 0
      %p61 = por %p59, %p60
      %p62 = scmp.ne.s32.totalorder %s54, %s56
      %p63 = scmp.eq.s32.totalorder %s25, 1
      %p64 = por %p62, %p63
      %p65 = scmp.ne.s32.totalorder %s56, %s57
      %p66 = scmp.eq.s32.totalorder %s25, 0
      %p67 = por %p65, %p66
      %p68 = scmp.ne.s32.totalorder %s56, %s57
      %p69 = scmp.eq.s32.totalorder %s26, 1
      %p70 = por %p68, %p69
      %p72 = scmp.ne.s32.totalorder %s57, %s71
      %p73 = scmp.eq.s32.totalorder %s26, 0
      %p74 = por %p72, %p73
      %s76 = sadd.s32 %s75, 1
      %p79 = scmp.eq.s32.totalorder %s20, 1
      %p80 = scmp.ne.s32.totalorder %s75, %s77
      %p81 = scmp.eq.s32.totalorder %s20, 0
      %p82 = por %p80, %p81
      %p83 = scmp.ne.s32.totalorder %s75, %s77
      %p84 = scmp.eq.s32.totalorder %s25, 1
      %p85 = por %p83, %p84
      %p86 = scmp.ne.s32.totalorder %s77, %s78
      %p87 = scmp.eq.s32.totalorder %s25, 0
      %p88 = por %p86, %p87
      %p89 = scmp.ne.s32.totalorder %s77, %s78
      %p90 = scmp.eq.s32.totalorder %s26, 1
      %p91 = por %p89, %p90
      %p93 = scmp.ne.s32.totalorder %s78, %s92
      %p94 = scmp.eq.s32.totalorder %s26, 0
      %p95 = por %p93, %p94
      %s97 = sadd.s32 %s96, 1
      %p100 = scmp.eq.s32.totalorder %s20, 1
      %p101 = scmp.ne.s32.totalorder %s96, %s98
      %p102 = scmp.eq.s32.totalorder %s20, 0
      %p103 = por %p101, %p102
      %p104 = scmp.ne.s32.totalorder %s96, %s98
      %p105 = scmp.eq.s32.totalorder %s25, 1
      %p106 = por %p104, %p105
      %p107 = scmp.ne.s32.totalorder %s98, %s99
      %p108 = scmp.eq.s32.totalorder %s25, 0
      %p109 = por %p107, %p108
      %p110 = scmp.ne.s32.totalorder %s98, %s99
      %p111 = scmp.eq.s32.totalorder %s26, 1
      %p112 = por %p110, %p111
      %p114 = scmp.ne.s32.totalorder %s99, %s113
      %p115 = scmp.eq.s32.totalorder %s26, 0
      %p116 = por %p114, %p115
      %s118 = sadd.s32 %s117, 1
      %p121 = scmp.eq.s32.totalorder %s20, 1
      %p122 = scmp.ne.s32.totalorder %s117, %s119
      %p123 = scmp.eq.s32.totalorder %s20, 0
      %p124 = por %p122, %p123
      %p125 = scmp.ne.s32.totalorder %s117, %s119
      %p126 = scmp.eq.s32.totalorder %s25, 1
      %p127 = por %p125, %p126
      %p128 = scmp.ne.s32.totalorder %s119, %s120
      %p129 = scmp.eq.s32.totalorder %s25, 0
      %p130 = por %p128, %p129
      %p131 = scmp.ne.s32.totalorder %s119, %s120
      %p132 = scmp.eq.s32.totalorder %s26, 1
      %p133 = por %p131, %p132
      %p135 = scmp.ne.s32.totalorder %s120, %s134
      %p136 = scmp.eq.s32.totalorder %s26, 0
      %p137 = por %p135, %p136
      %s139 = sadd.s32 %s138, 1
      %p142 = scmp.eq.s32.totalorder %s20, 1
      %p143 = scmp.ne.s32.totalorder %s138, %s140
      %p144 = scmp.eq.s32.totalorder %s20, 0
      %p145 = por %p143, %p144
      %p146 = scmp.ne.s32.totalorder %s138, %s140
      %p147 = scmp.eq.s32.totalorder %s25, 1
      %p148 = por %p146, %p147
      %p149 = scmp.ne.s32.totalorder %s140, %s141
      %p150 = scmp.eq.s32.totalorder %s25, 0
      %p151 = por %p149, %p150
      %p152 = scmp.ne.s32.totalorder %s140, %s141
      %p153 = scmp.eq.s32.totalorder %s26, 1
      %p154 = por %p152, %p153
      %p156 = scmp.ne.s32.totalorder %s141, %s155
      %p157 = scmp.eq.s32.totalorder %s26, 0
      %p158 = por %p156, %p157
      %s159 = ssub.s32 %s20, %s27
      %p160 = scmp.eq.s32.totalorder %s159, 0
      %s162 = sadd.s32 %s161, 1
      %s163 = scalar_select %p160, %s161, %s162
      %p166 = pneg %p160
      %p167 = scmp.eq.s32.totalorder %s20, 1
      %p168 = por %p166, %p167
      %p169 = scmp.ne.s32.totalorder %s161, %s164
      %p170 = scmp.eq.s32.totalorder %s20, 0
      %p171 = por %p169, %p170
      %p172 = scmp.ne.s32.totalorder %s161, %s164
      %p173 = scmp.eq.s32.totalorder %s25, 1
      %p174 = por %p172, %p173
      %p175 = scmp.ne.s32.totalorder %s164, %s165
      %p176 = scmp.eq.s32.totalorder %s25, 0
      %p177 = por %p175, %p176
      %p178 = scmp.ne.s32.totalorder %s164, %s165
      %p179 = scmp.eq.s32.totalorder %s26, 1
      %p180 = por %p178, %p179
      %p182 = scmp.ne.s32.totalorder %s165, %s181
      %p183 = scmp.eq.s32.totalorder %s26, 0
      %p184 = por %p182, %p183
      %p185 = scmp.le.s32.totalorder 1, %s20
      %p186 = scmp.lt.s32.totalorder %s20, 3
      %p187 = pnand %p185, %p186
      %p188 = pneg %p187
      // Predicated region
      $region9: #{tpu_custom_call.1} parent=5 // pred_check
        _
      $region10: #{tpu_custom_call.1} parent=5 // pred_check_branch
        %190 = sbr.rel (%p187) target = $region12
      $region11: #{tpu_custom_call.1} parent=5 // pred_region
        %s191 = ssub.s32 %s20, 1
        // Predicated region
        $region13: #{tpu_custom_call.1} parent=11 // pred_check
          %p192 = pneg %p67
        $region14: #{tpu_custom_call.1} parent=11 // pred_check_branch
          %194 = sbr.rel (%p192) target = $region16
        $region15: #{tpu_custom_call.1} parent=11 // pred_region
          %196 = vsyncadd [#allocation6], 0
          %s197 = sshll.u32 %s1, 4
          %s198 = int_to_ptr.hbm [resolvable:$true] %s197
          %s199 = sshll.u32 [#allocation5], 4
          %s200 = int_to_ptr.vmem [resolvable:$true] %s199
          %205 = dma.hbm_to_vmem [thread:$0]  %s198, 4096, %s200, [#allocation6], 128, 128, 8
        $region16: #{tpu_custom_call.1} parent=11 // pred_fallthru
          _
        // Predicated region
        $region17: #{tpu_custom_call.1} parent=11 // pred_check
          %p206 = pneg %p88
        $region18: #{tpu_custom_call.1} parent=11 // pred_check_branch
          %208 = sbr.rel (%p206) target = $region20
        $region19: #{tpu_custom_call.1} parent=11 // pred_region
          %210 = vsyncadd [#allocation6], 0
          %s211 = sshll.u32 %s2, 4
          %s212 = int_to_ptr.hbm [resolvable:$true] %s211
          %s213 = sshll.u32 [#allocation7], 4
          %s214 = int_to_ptr.vmem [resolvable:$true] %s213
          %219 = dma.hbm_to_vmem [thread:$0]  %s212, 8192, %s214, [#allocation6], 256, 256, 16
        $region20: #{tpu_custom_call.1} parent=11 // pred_fallthru
          _
        // Predicated region
        $region21: #{tpu_custom_call.1} parent=11 // pred_check
          %p220 = pneg %p109
        $region22: #{tpu_custom_call.1} parent=11 // pred_check_branch
          %222 = sbr.rel (%p220) target = $region24
        $region23: #{tpu_custom_call.1} parent=11 // pred_region
          %224 = vsyncadd [#allocation9], 0
          %s226 = sshll.u32 %s3, 4
          %s227 = int_to_ptr.hbm [resolvable:$true] %s226
          %s228 = sshll.u32 [#allocation8], 4
          %s229 = int_to_ptr.vmem [resolvable:$true] %s228
          %231 = dma.hbm_to_vmem [thread:$0]  %s227, 64, %s229, [#allocation9]
        $region24: #{tpu_custom_call.1} parent=11 // pred_fallthru
          _
        // Predicated region
        $region25: #{tpu_custom_call.1} parent=11 // pred_check
          %p232 = pneg %p130
        $region26: #{tpu_custom_call.1} parent=11 // pred_check_branch
          %234 = sbr.rel (%p232) target = $region28
        $region27: #{tpu_custom_call.1} parent=11 // pred_region
          %236 = vsyncadd [#allocation9], 0
          %s237 = sshll.u32 %s4, 4
          %s238 = int_to_ptr.hbm [resolvable:$true] %s237
          %s239 = sshll.u32 [#allocation10], 4
          %s240 = int_to_ptr.vmem [resolvable:$true] %s239
          %245 = dma.hbm_to_vmem [thread:$0]  %s238, 4096, %s240, [#allocation9], 64, 64, 4
        $region28: #{tpu_custom_call.1} parent=11 // pred_fallthru
          _
        // Predicated region
        $region29: #{tpu_custom_call.1} parent=11 // pred_check
          %p246 = pneg %p151
        $region30: #{tpu_custom_call.1} parent=11 // pred_check_branch
          %248 = sbr.rel (%p246) target = $region32
        $region31: #{tpu_custom_call.1} parent=11 // pred_region
          _
        $region32: #{tpu_custom_call.1} parent=11 // pred_fallthru
          _
      $region12: #{tpu_custom_call.1} parent=5 // pred_fallthru
        _
      %p249 = scmp.lt.s32.totalorder %s20, 2
      // Predicated region
      $region33: #{tpu_custom_call.1} parent=5 // pred_check
        %p250 = pneg %p249
      $region34: #{tpu_custom_call.1} parent=5 // pred_check_branch
        %252 = sbr.rel (%p250) target = $region36
      $region35: #{tpu_custom_call.1} parent=5 // pred_region
        // Predicated region
        $region37: #{tpu_custom_call.1} parent=35 // pred_check
          %p253 = pneg %p40
        $region38: #{tpu_custom_call.1} parent=35 // pred_check_branch
          %255 = sbr.rel (%p253) target = $region40
        $region39: #{tpu_custom_call.1} parent=35 // pred_region
          %s256 = sand.u32 %s30, 1
          %s257 = scalar_lea.sflag [#allocation3], %s256
          %s258 = sand.u32 %s30, 1
          %s259 = smul.addr %s258, 128
          %s260 = scalar_lea.vmem [#allocation2], %s259
          %s261 = smul.u32 16, %s20
          %263 = vsyncadd %s257, 0
          %s264 = smul.addr %s261, 2
          %s265 = smul.addr %s264, 4
          %s266 = scalar_lea.hbm %s0, %s265
          %s267 = sshll.u32 %s266, 4
          %s268 = int_to_ptr.hbm [resolvable:$true] %s267
          %s269 = sshll.u32 %s260, 4
          %s270 = int_to_ptr.vmem [resolvable:$true] %s269
          %275 = dma.hbm_to_vmem [thread:$0]  %s268, 2048, %s270, %s257, 128, 128, 8
        $region40: #{tpu_custom_call.1} parent=35 // pred_fallthru
          _
      $region36: #{tpu_custom_call.1} parent=5 // pred_fallthru
        _
      %p276 = scmp.le.s32.totalorder 1, %s20
      %p277 = scmp.lt.s32.totalorder %s20, 3
      %p278 = pnand %p276, %p277
      %p279 = pneg %p278
      // Predicated region
      $region41: #{tpu_custom_call.1} parent=5 // pred_check
        _
      $region42: #{tpu_custom_call.1} parent=5 // pred_check_branch
        %281 = sbr.rel (%p278) target = $region44
      $region43: #{tpu_custom_call.1} parent=5 // pred_region
        %s282 = ssub.s32 %s20, 1
        %s283 = sand.u32 %s33, 1
        %s284 = scalar_lea.sflag [#allocation3], %s283
        %s285 = sand.u32 %s33, 1
        %s286 = smul.addr %s285, 128
        %s287 = scalar_lea.vmem [#allocation2], %s286
        // Predicated region
        $region45: #{tpu_custom_call.1} parent=43 // pred_check
          %p288 = pneg %p46
        $region46: #{tpu_custom_call.1} parent=43 // pred_check_branch
          %290 = sbr.rel (%p288) target = $region48
        $region47: #{tpu_custom_call.1} parent=43 // pred_region
          %292 = dma.done %s284, 2048
        $region48: #{tpu_custom_call.1} parent=43 // pred_fallthru
          _
        // Predicated region
        $region49: #{tpu_custom_call.1} parent=43 // pred_check
          %p293 = pneg %p67
        $region50: #{tpu_custom_call.1} parent=43 // pred_check_branch
          %295 = sbr.rel (%p293) target = $region52
        $region51: #{tpu_custom_call.1} parent=43 // pred_region
          %297 = dma.done [#allocation6], 4096
        $region52: #{tpu_custom_call.1} parent=43 // pred_fallthru
          _
        // Predicated region
        $region53: #{tpu_custom_call.1} parent=43 // pred_check
          %p298 = pneg %p88
        $region54: #{tpu_custom_call.1} parent=43 // pred_check_branch
          %300 = sbr.rel (%p298) target = $region56
        $region55: #{tpu_custom_call.1} parent=43 // pred_region
          %302 = dma.done [#allocation6], 8192
        $region56: #{tpu_custom_call.1} parent=43 // pred_fallthru
          _
        // Predicated region
        $region57: #{tpu_custom_call.1} parent=43 // pred_check
          %p303 = pneg %p109
        $region58: #{tpu_custom_call.1} parent=43 // pred_check_branch
          %305 = sbr.rel (%p303) target = $region60
        $region59: #{tpu_custom_call.1} parent=43 // pred_region
          %307 = dma.done [#allocation9], 64
        $region60: #{tpu_custom_call.1} parent=43 // pred_fallthru
          _
        // Predicated region
        $region61: #{tpu_custom_call.1} parent=43 // pred_check
          %p308 = pneg %p130
        $region62: #{tpu_custom_call.1} parent=43 // pred_check_branch
          %310 = sbr.rel (%p308) target = $region64
        $region63: #{tpu_custom_call.1} parent=43 // pred_region
          %312 = dma.done [#allocation9], 4096
        $region64: #{tpu_custom_call.1} parent=43 // pred_fallthru
          _
        %s313 = sand.u32 %s33, 1
        %s314 = scalar_lea.sflag [#allocation3], %s313
        %s315 = sand.u32 %s33, 1
        %s316 = smul.addr %s315, 128
        %s317 = scalar_lea.vmem [#allocation2], %s316
        %p318 = pneg %p46
        %p319 = pneg %p43
        %p320 = pneg %p67
        %p321 = pneg %p64
        %p322 = pneg %p88
        %p323 = pneg %p85
        %p324 = pneg %p109
        %p325 = pneg %p106
        %p326 = pneg %p130
        %p327 = pneg %p127
        %p328 = pneg %p151
        %p329 = pneg %p148
        %p330 = pneg %p177
        %p331 = pneg %p174
        %s332 = sand.u32 %s164, 1
        %s333 = scalar_lea.sflag [#allocation4], %s332
        %s334 = sand.u32 %s164, 1
        %s335 = smul.addr %s334, 64
        %s336 = scalar_lea.vmem [#allocation11], %s335
        %s337 = smul.u32 16, %s25
        %s338 = smul.u32 16, %s25
        %v339 = vld [vmem:[%s287] sm:$0xff]
        %v340 = vld [vmem:[%s287 + $0x8] sm:$0xff]
        %v341 = vld [vmem:[%s287 + $0x10] sm:$0xff]
        %v342 = vld [vmem:[%s287 + $0x18] sm:$0xff]
        %v343 = vld [vmem:[%s287 + $0x20] sm:$0xff]
        %v344 = vld [vmem:[%s287 + $0x28] sm:$0xff]
        %v345 = vld [vmem:[%s287 + $0x30] sm:$0xff]
        %v346 = vld [vmem:[%s287 + $0x38] sm:$0xff]
        %v347 = vld [vmem:[%s287 + $0x40] sm:$0xff]
        %v348 = vld [vmem:[%s287 + $0x48] sm:$0xff]
        %v349 = vld [vmem:[%s287 + $0x50] sm:$0xff]
        %v350 = vld [vmem:[%s287 + $0x58] sm:$0xff]
        %v351 = vld [vmem:[%s287 + $0x60] sm:$0xff]
        %v352 = vld [vmem:[%s287 + $0x68] sm:$0xff]
        %v353 = vld [vmem:[%s287 + $0x70] sm:$0xff]
        %v354 = vld [vmem:[%s287 + $0x78] sm:$0xff]
        %v355 = vld [vmem:[#allocation5] sm:$0xff]
        %v356 = vld [vmem:[#allocation5 + $0x8] sm:$0xff]
        %v357 = vld [vmem:[#allocation5 + $0x10] sm:$0xff]
        %v358 = vld [vmem:[#allocation5 + $0x18] sm:$0xff]
        %v359 = vld [vmem:[#allocation5 + $0x20] sm:$0xff]
        %v360 = vld [vmem:[#allocation5 + $0x28] sm:$0xff]
        %v361 = vld [vmem:[#allocation5 + $0x30] sm:$0xff]
        %v362 = vld [vmem:[#allocation5 + $0x38] sm:$0xff]
        %v363 = vld [vmem:[#allocation5 + $0x40] sm:$0xff]
        %v364 = vld [vmem:[#allocation5 + $0x48] sm:$0xff]
        %v365 = vld [vmem:[#allocation5 + $0x50] sm:$0xff]
        %v366 = vld [vmem:[#allocation5 + $0x58] sm:$0xff]
        %v367 = vld [vmem:[#allocation5 + $0x60] sm:$0xff]
        %v368 = vld [vmem:[#allocation5 + $0x68] sm:$0xff]
        %v369 = vld [vmem:[#allocation5 + $0x70] sm:$0xff]
        %v370 = vld [vmem:[#allocation5 + $0x78] sm:$0xff]
        %v371 = vld [vmem:[#allocation5 + $0x80] sm:$0xff]
        %v372 = vld [vmem:[#allocation5 + $0x88] sm:$0xff]
        %v373 = vld [vmem:[#allocation5 + $0x90] sm:$0xff]
        %v374 = vld [vmem:[#allocation5 + $0x98] sm:$0xff]
        %v375 = vld [vmem:[#allocation5 + $0xa0] sm:$0xff]
        %v376 = vld [vmem:[#allocation5 + $0xa8] sm:$0xff]
        %v377 = vld [vmem:[#allocation5 + $0xb0] sm:$0xff]
        %v378 = vld [vmem:[#allocation5 + $0xb8] sm:$0xff]
        %v379 = vld [vmem:[#allocation5 + $0xc0] sm:$0xff]
        %v380 = vld [vmem:[#allocation5 + $0xc8] sm:$0xff]
        %v381 = vld [vmem:[#allocation5 + $0xd0] sm:$0xff]
        %v382 = vld [vmem:[#allocation5 + $0xd8] sm:$0xff]
        %v383 = vld [vmem:[#allocation5 + $0xe0] sm:$0xff]
        %v384 = vld [vmem:[#allocation5 + $0xe8] sm:$0xff]
        %v385 = vld [vmem:[#allocation5 + $0xf0] sm:$0xff]
        %v386 = vld [vmem:[#allocation5 + $0xf8] sm:$0xff]
        %v403 = vunpack.c.l.b16 %v339
        %v404 = vunpack.c.h.b16 %v339
        %v405 = vunpack.c.l.b16 %v340
        %v406 = vunpack.c.h.b16 %v340
        %v407 = vunpack.c.l.b16 %v341
        %v408 = vunpack.c.h.b16 %v341
        %v409 = vunpack.c.l.b16 %v342
        %v410 = vunpack.c.h.b16 %v342
        %v411 = vunpack.c.l.b16 %v343
        %v412 = vunpack.c.h.b16 %v343
        %v413 = vunpack.c.l.b16 %v344
        %v414 = vunpack.c.h.b16 %v344
        %v415 = vunpack.c.l.b16 %v345
        %v416 = vunpack.c.h.b16 %v345
        %v417 = vunpack.c.l.b16 %v346
        %v418 = vunpack.c.h.b16 %v346
        %v419 = vunpack.c.l.b16 %v347
        %v420 = vunpack.c.h.b16 %v347
        %v421 = vunpack.c.l.b16 %v348
        %v422 = vunpack.c.h.b16 %v348
        %v423 = vunpack.c.l.b16 %v349
        %v424 = vunpack.c.h.b16 %v349
        %v425 = vunpack.c.l.b16 %v350
        %v426 = vunpack.c.h.b16 %v350
        %v427 = vunpack.c.l.b16 %v351
        %v428 = vunpack.c.h.b16 %v351
        %v429 = vunpack.c.l.b16 %v352
        %v430 = vunpack.c.h.b16 %v352
        %v431 = vunpack.c.l.b16 %v353
        %v432 = vunpack.c.h.b16 %v353
        %v433 = vunpack.c.l.b16 %v354
        %v434 = vunpack.c.h.b16 %v354
        %v435 = vpack.c.b16 %v405, %v403
        %v436 = vpack.c.b16 %v406, %v404
        %v437 = vpack.c.b16 %v409, %v407
        %v438 = vpack.c.b16 %v410, %v408
        %v439 = vpack.c.b16 %v413, %v411
        %v440 = vpack.c.b16 %v414, %v412
        %v441 = vpack.c.b16 %v417, %v415
        %v442 = vpack.c.b16 %v418, %v416
        %v443 = vpack.c.b16 %v421, %v419
        %v444 = vpack.c.b16 %v422, %v420
        %v445 = vpack.c.b16 %v425, %v423
        %v446 = vpack.c.b16 %v426, %v424
        %v447 = vpack.c.b16 %v429, %v427
        %v448 = vpack.c.b16 %v430, %v428
        %v449 = vpack.c.b16 %v433, %v431
        %v450 = vpack.c.b16 %v434, %v432
        %v499 = vunpack.c.l.b16 %v355
        %v500 = vunpack.c.h.b16 %v355
        %v501 = vunpack.c.l.b16 %v356
        %v502 = vunpack.c.h.b16 %v356
        %v503 = vunpack.c.l.b16 %v357
        %v504 = vunpack.c.h.b16 %v357
        %v505 = vunpack.c.l.b16 %v358
        %v506 = vunpack.c.h.b16 %v358
        %v507 = vunpack.c.l.b16 %v359
        %v508 = vunpack.c.h.b16 %v359
        %v509 = vunpack.c.l.b16 %v360
        %v510 = vunpack.c.h.b16 %v360
        %v511 = vunpack.c.l.b16 %v361
        %v512 = vunpack.c.h.b16 %v361
        %v513 = vunpack.c.l.b16 %v362
        %v514 = vunpack.c.h.b16 %v362
        %v515 = vunpack.c.l.b16 %v363
        %v516 = vunpack.c.h.b16 %v363
        %v517 = vunpack.c.l.b16 %v364
        %v518 = vunpack.c.h.b16 %v364
        %v519 = vunpack.c.l.b16 %v365
        %v520 = vunpack.c.h.b16 %v365
        %v521 = vunpack.c.l.b16 %v366
        %v522 = vunpack.c.h.b16 %v366
        %v523 = vunpack.c.l.b16 %v367
        %v524 = vunpack.c.h.b16 %v367
        %v525 = vunpack.c.l.b16 %v368
        %v526 = vunpack.c.h.b16 %v368
        %v527 = vunpack.c.l.b16 %v369
        %v528 = vunpack.c.h.b16 %v369
        %v529 = vunpack.c.l.b16 %v370
        %v530 = vunpack.c.h.b16 %v370
        %v531 = vunpack.c.l.b16 %v371
        %v532 = vunpack.c.h.b16 %v371
        %v533 = vunpack.c.l.b16 %v372
        %v534 = vunpack.c.h.b16 %v372
        %v535 = vunpack.c.l.b16 %v373
        %v536 = vunpack.c.h.b16 %v373
        %v537 = vunpack.c.l.b16 %v374
        %v538 = vunpack.c.h.b16 %v374
        %v539 = vunpack.c.l.b16 %v375
        %v540 = vunpack.c.h.b16 %v375
        %v541 = vunpack.c.l.b16 %v376
        %v542 = vunpack.c.h.b16 %v376
        %v543 = vunpack.c.l.b16 %v377
        %v544 = vunpack.c.h.b16 %v377
        %v545 = vunpack.c.l.b16 %v378
        %v546 = vunpack.c.h.b16 %v378
        %v547 = vunpack.c.l.b16 %v379
        %v548 = vunpack.c.h.b16 %v379
        %v549 = vunpack.c.l.b16 %v380
        %v550 = vunpack.c.h.b16 %v380
        %v551 = vunpack.c.l.b16 %v381
        %v552 = vunpack.c.h.b16 %v381
        %v553 = vunpack.c.l.b16 %v382
        %v554 = vunpack.c.h.b16 %v382
        %v555 = vunpack.c.l.b16 %v383
        %v556 = vunpack.c.h.b16 %v383
        %v557 = vunpack.c.l.b16 %v384
        %v558 = vunpack.c.h.b16 %v384
        %v559 = vunpack.c.l.b16 %v385
        %v560 = vunpack.c.h.b16 %v385
        %v561 = vunpack.c.l.b16 %v386
        %v562 = vunpack.c.h.b16 %v386
        %v563 = vpack.c.b16 %v501, %v499
        %v564 = vpack.c.b16 %v502, %v500
        %v565 = vpack.c.b16 %v505, %v503
        %v566 = vpack.c.b16 %v506, %v504
        %v567 = vpack.c.b16 %v509, %v507
        %v568 = vpack.c.b16 %v510, %v508
        %v569 = vpack.c.b16 %v513, %v511
        %v570 = vpack.c.b16 %v514, %v512
        %v571 = vpack.c.b16 %v517, %v515
        %v572 = vpack.c.b16 %v518, %v516
        %v573 = vpack.c.b16 %v521, %v519
        %v574 = vpack.c.b16 %v522, %v520
        %v575 = vpack.c.b16 %v525, %v523
        %v576 = vpack.c.b16 %v526, %v524
        %v577 = vpack.c.b16 %v529, %v527
        %v578 = vpack.c.b16 %v530, %v528
        %v579 = vpack.c.b16 %v533, %v531
        %v580 = vpack.c.b16 %v534, %v532
        %v581 = vpack.c.b16 %v537, %v535
        %v582 = vpack.c.b16 %v538, %v536
        %v583 = vpack.c.b16 %v541, %v539
        %v584 = vpack.c.b16 %v542, %v540
        %v585 = vpack.c.b16 %v545, %v543
        %v586 = vpack.c.b16 %v546, %v544
        %v587 = vpack.c.b16 %v549, %v547
        %v588 = vpack.c.b16 %v550, %v548
        %v589 = vpack.c.b16 %v553, %v551
        %v590 = vpack.c.b16 %v554, %v552
        %v591 = vpack.c.b16 %v557, %v555
        %v592 = vpack.c.b16 %v558, %v556
        %v593 = vpack.c.b16 %v561, %v559
        %v594 = vpack.c.b16 %v562, %v560
        %627 = vmatpush.bf16.msra.mxu0 %v577
        %628 = vmatpush.bf16.msra.mxu0 %v575
        %629 = vmatpush.bf16.msra.mxu0 %v573
        %630 = vmatpush.bf16.msra.mxu0 %v571
        %631 = vmatpush.bf16.msra.mxu0 %v569
        %632 = vmatpush.bf16.msra.mxu0 %v567
        %633 = vmatpush.bf16.msra.mxu0 %v565
        %634 = vmatpush.bf16.msra.mxu0 %v563
        %635 = vmatmul.bf16.gmra.mxu0 %v435
        %v636 = vpop.f32.mrf.mxu0
        %v637 = vadd.f32 0.0, %v636
        %v638 = vpop.f32.mrf.mxu0
        %v639 = vadd.f32 0.0, %v638
        %640 = vmatmul.bf16.gmra.mxu0 %v437
        %v641 = vpop.f32.mrf.mxu0
        %v642 = vadd.f32 0.0, %v641
        %v643 = vpop.f32.mrf.mxu0
        %v644 = vadd.f32 0.0, %v643
        %645 = vmatmul.bf16.gmra.mxu0 %v439
        %v646 = vpop.f32.mrf.mxu0
        %v647 = vadd.f32 0.0, %v646
        %v648 = vpop.f32.mrf.mxu0
        %v649 = vadd.f32 0.0, %v648
        %650 = vmatmul.bf16.gmra.mxu0 %v441
        %v651 = vpop.f32.mrf.mxu0
        %v652 = vadd.f32 0.0, %v651
        %v653 = vpop.f32.mrf.mxu0
        %v654 = vadd.f32 0.0, %v653
        %655 = vmatmul.bf16.gmra.mxu0 %v443
        %v656 = vpop.f32.mrf.mxu0
        %v657 = vadd.f32 0.0, %v656
        %v658 = vpop.f32.mrf.mxu0
        %v659 = vadd.f32 0.0, %v658
        %660 = vmatmul.bf16.gmra.mxu0 %v445
        %v661 = vpop.f32.mrf.mxu0
        %v662 = vadd.f32 0.0, %v661
        %v663 = vpop.f32.mrf.mxu0
        %v664 = vadd.f32 0.0, %v663
        %665 = vmatmul.bf16.gmra.mxu0 %v447
        %v666 = vpop.f32.mrf.mxu0
        %v667 = vadd.f32 0.0, %v666
        %v668 = vpop.f32.mrf.mxu0
        %v669 = vadd.f32 0.0, %v668
        %670 = vmatmul.bf16.gmra.mxu0 %v449
        %v671 = vpop.f32.mrf.mxu0
        %v672 = vadd.f32 0.0, %v671
        %v673 = vpop.f32.mrf.mxu0
        %v674 = vadd.f32 0.0, %v673
        %675 = vdwg.mxu0
        %676 = vmatpush.bf16.msra.mxu0 %v593
        %677 = vmatpush.bf16.msra.mxu0 %v591
        %678 = vmatpush.bf16.msra.mxu0 %v589
        %679 = vmatpush.bf16.msra.mxu0 %v587
        %680 = vmatpush.bf16.msra.mxu0 %v585
        %681 = vmatpush.bf16.msra.mxu0 %v583
        %682 = vmatpush.bf16.msra.mxu0 %v581
        %683 = vmatpush.bf16.msra.mxu0 %v579
        %684 = vmatmul.bf16.gmra.mxu0 %v436
        %v685 = vpop.f32.mrf.mxu0
        %v686 = vadd.f32 %v637, %v685
        %v687 = vpop.f32.mrf.mxu0
        %v688 = vadd.f32 %v639, %v687
        %689 = vmatmul.bf16.gmra.mxu0 %v438
        %v690 = vpop.f32.mrf.mxu0
        %v691 = vadd.f32 %v642, %v690
        %v692 = vpop.f32.mrf.mxu0
        %v693 = vadd.f32 %v644, %v692
        %694 = vmatmul.bf16.gmra.mxu0 %v440
        %v695 = vpop.f32.mrf.mxu0
        %v696 = vadd.f32 %v647, %v695
        %v697 = vpop.f32.mrf.mxu0
        %v698 = vadd.f32 %v649, %v697
        %699 = vmatmul.bf16.gmra.mxu0 %v442
        %v700 = vpop.f32.mrf.mxu0
        %v701 = vadd.f32 %v652, %v700
        %v702 = vpop.f32.mrf.mxu0
        %v703 = vadd.f32 %v654, %v702
        %704 = vmatmul.bf16.gmra.mxu0 %v444
        %v705 = vpop.f32.mrf.mxu0
        %v706 = vadd.f32 %v657, %v705
        %v707 = vpop.f32.mrf.mxu0
        %v708 = vadd.f32 %v659, %v707
        %709 = vmatmul.bf16.gmra.mxu0 %v446
        %v710 = vpop.f32.mrf.mxu0
        %v711 = vadd.f32 %v662, %v710
        %v712 = vpop.f32.mrf.mxu0
        %v713 = vadd.f32 %v664, %v712
        %714 = vmatmul.bf16.gmra.mxu0 %v448
        %v715 = vpop.f32.mrf.mxu0
        %v716 = vadd.f32 %v667, %v715
        %v717 = vpop.f32.mrf.mxu0
        %v718 = vadd.f32 %v669, %v717
        %719 = vmatmul.bf16.gmra.mxu0 %v450
        %v720 = vpop.f32.mrf.mxu0
        %v721 = vadd.f32 %v672, %v720
        %v722 = vpop.f32.mrf.mxu0
        %v723 = vadd.f32 %v674, %v722
        %724 = vdwg.mxu0
        %725 = vmatpush.bf16.msra.mxu0 %v578
        %726 = vmatpush.bf16.msra.mxu0 %v576
        %727 = vmatpush.bf16.msra.mxu0 %v574
        %728 = vmatpush.bf16.msra.mxu0 %v572
        %729 = vmatpush.bf16.msra.mxu0 %v570
        %730 = vmatpush.bf16.msra.mxu0 %v568
        %731 = vmatpush.bf16.msra.mxu0 %v566
        %732 = vmatpush.bf16.msra.mxu0 %v564
        %733 = vmatmul.bf16.gmra.mxu0 %v435
        %v734 = vpop.f32.mrf.mxu0
        %v735 = vadd.f32 0.0, %v734
        %v736 = vpop.f32.mrf.mxu0
        %v737 = vadd.f32 0.0, %v736
        %738 = vmatmul.bf16.gmra.mxu0 %v437
        %v739 = vpop.f32.mrf.mxu0
        %v740 = vadd.f32 0.0, %v739
        %v741 = vpop.f32.mrf.mxu0
        %v742 = vadd.f32 0.0, %v741
        %743 = vmatmul.bf16.gmra.mxu0 %v439
        %v744 = vpop.f32.mrf.mxu0
        %v745 = vadd.f32 0.0, %v744
        %v746 = vpop.f32.mrf.mxu0
        %v747 = vadd.f32 0.0, %v746
        %748 = vmatmul.bf16.gmra.mxu0 %v441
        %v749 = vpop.f32.mrf.mxu0
        %v750 = vadd.f32 0.0, %v749
        %v751 = vpop.f32.mrf.mxu0
        %v752 = vadd.f32 0.0, %v751
        %753 = vmatmul.bf16.gmra.mxu0 %v443
        %v754 = vpop.f32.mrf.mxu0
        %v755 = vadd.f32 0.0, %v754
        %v756 = vpop.f32.mrf.mxu0
        %v757 = vadd.f32 0.0, %v756
        %758 = vmatmul.bf16.gmra.mxu0 %v445
        %v759 = vpop.f32.mrf.mxu0
        %v760 = vadd.f32 0.0, %v759
        %v761 = vpop.f32.mrf.mxu0
        %v762 = vadd.f32 0.0, %v761
        %763 = vmatmul.bf16.gmra.mxu0 %v447
        %v764 = vpop.f32.mrf.mxu0
        %v765 = vadd.f32 0.0, %v764
        %v766 = vpop.f32.mrf.mxu0
        %v767 = vadd.f32 0.0, %v766
        %768 = vmatmul.bf16.gmra.mxu0 %v449
        %v769 = vpop.f32.mrf.mxu0
        %v770 = vadd.f32 0.0, %v769
        %v771 = vpop.f32.mrf.mxu0
        %v772 = vadd.f32 0.0, %v771
        %773 = vdwg.mxu0
        %774 = vmatpush.bf16.msra.mxu0 %v594
        %775 = vmatpush.bf16.msra.mxu0 %v592
        %776 = vmatpush.bf16.msra.mxu0 %v590
        %777 = vmatpush.bf16.msra.mxu0 %v588
        %778 = vmatpush.bf16.msra.mxu0 %v586
        %779 = vmatpush.bf16.msra.mxu0 %v584
        %780 = vmatpush.bf16.msra.mxu0 %v582
        %781 = vmatpush.bf16.msra.mxu0 %v580
        %782 = vmatmul.bf16.gmra.mxu0 %v436
        %v783 = vpop.f32.mrf.mxu0
        %v784 = vadd.f32 %v735, %v783
        %v785 = vpop.f32.mrf.mxu0
        %v786 = vadd.f32 %v737, %v785
        %787 = vmatmul.bf16.gmra.mxu0 %v438
        %v788 = vpop.f32.mrf.mxu0
        %v789 = vadd.f32 %v740, %v788
        %v790 = vpop.f32.mrf.mxu0
        %v791 = vadd.f32 %v742, %v790
        %792 = vmatmul.bf16.gmra.mxu0 %v440
        %v793 = vpop.f32.mrf.mxu0
        %v794 = vadd.f32 %v745, %v793
        %v795 = vpop.f32.mrf.mxu0
        %v796 = vadd.f32 %v747, %v795
        %797 = vmatmul.bf16.gmra.mxu0 %v442
        %v798 = vpop.f32.mrf.mxu0
        %v799 = vadd.f32 %v750, %v798
        %v800 = vpop.f32.mrf.mxu0
        %v801 = vadd.f32 %v752, %v800
        %802 = vmatmul.bf16.gmra.mxu0 %v444
        %v803 = vpop.f32.mrf.mxu0
        %v804 = vadd.f32 %v755, %v803
        %v805 = vpop.f32.mrf.mxu0
        %v806 = vadd.f32 %v757, %v805
        %807 = vmatmul.bf16.gmra.mxu0 %v446
        %v808 = vpop.f32.mrf.mxu0
        %v809 = vadd.f32 %v760, %v808
        %v810 = vpop.f32.mrf.mxu0
        %v811 = vadd.f32 %v762, %v810
        %812 = vmatmul.bf16.gmra.mxu0 %v448
        %v813 = vpop.f32.mrf.mxu0
        %v814 = vadd.f32 %v765, %v813
        %v815 = vpop.f32.mrf.mxu0
        %v816 = vadd.f32 %v767, %v815
        %817 = vmatmul.bf16.gmra.mxu0 %v450
        %v818 = vpop.f32.mrf.mxu0
        %v819 = vadd.f32 %v770, %v818
        %v820 = vpop.f32.mrf.mxu0
        %v821 = vadd.f32 %v772, %v820
        %822 = vdwg.mxu0
        %v823 = vpack.c.bf16 %v688, %v686
        %v824 = vpack.c.bf16 %v786, %v784
        %v825 = vpack.c.bf16 %v693, %v691
        %v826 = vpack.c.bf16 %v791, %v789
        %v827 = vpack.c.bf16 %v698, %v696
        %v828 = vpack.c.bf16 %v796, %v794
        %v829 = vpack.c.bf16 %v703, %v701
        %v830 = vpack.c.bf16 %v801, %v799
        %v831 = vpack.c.bf16 %v708, %v706
        %v832 = vpack.c.bf16 %v806, %v804
        %v833 = vpack.c.bf16 %v713, %v711
        %v834 = vpack.c.bf16 %v811, %v809
        %v835 = vpack.c.bf16 %v718, %v716
        %v836 = vpack.c.bf16 %v816, %v814
        %v837 = vpack.c.bf16 %v723, %v721
        %v838 = vpack.c.bf16 %v821, %v819
        %v839 = vld [vmem:[#allocation7] sm:$0xff]
        %v840 = vld [vmem:[#allocation7 + $0x8] sm:$0xff]
        %v841 = vld [vmem:[#allocation7 + $0x10] sm:$0xff]
        %v842 = vld [vmem:[#allocation7 + $0x18] sm:$0xff]
        %v843 = vld [vmem:[#allocation7 + $0x20] sm:$0xff]
        %v844 = vld [vmem:[#allocation7 + $0x28] sm:$0xff]
        %v845 = vld [vmem:[#allocation7 + $0x30] sm:$0xff]
        %v846 = vld [vmem:[#allocation7 + $0x38] sm:$0xff]
        %v847 = vld [vmem:[#allocation7 + $0x40] sm:$0xff]
        %v848 = vld [vmem:[#allocation7 + $0x48] sm:$0xff]
        %v849 = vld [vmem:[#allocation7 + $0x50] sm:$0xff]
        %v850 = vld [vmem:[#allocation7 + $0x58] sm:$0xff]
        %v851 = vld [vmem:[#allocation7 + $0x60] sm:$0xff]
        %v852 = vld [vmem:[#allocation7 + $0x68] sm:$0xff]
        %v853 = vld [vmem:[#allocation7 + $0x70] sm:$0xff]
        %v854 = vld [vmem:[#allocation7 + $0x78] sm:$0xff]
        %v855 = vld [vmem:[#allocation7 + $0x80] sm:$0xff]
        %v856 = vld [vmem:[#allocation7 + $0x88] sm:$0xff]
        %v857 = vld [vmem:[#allocation7 + $0x90] sm:$0xff]
        %v858 = vld [vmem:[#allocation7 + $0x98] sm:$0xff]
        %v859 = vld [vmem:[#allocation7 + $0xa0] sm:$0xff]
        %v860 = vld [vmem:[#allocation7 + $0xa8] sm:$0xff]
        %v861 = vld [vmem:[#allocation7 + $0xb0] sm:$0xff]
        %v862 = vld [vmem:[#allocation7 + $0xb8] sm:$0xff]
        %v863 = vld [vmem:[#allocation7 + $0xc0] sm:$0xff]
        %v864 = vld [vmem:[#allocation7 + $0xc8] sm:$0xff]
        %v865 = vld [vmem:[#allocation7 + $0xd0] sm:$0xff]
        %v866 = vld [vmem:[#allocation7 + $0xd8] sm:$0xff]
        %v867 = vld [vmem:[#allocation7 + $0xe0] sm:$0xff]
        %v868 = vld [vmem:[#allocation7 + $0xe8] sm:$0xff]
        %v869 = vld [vmem:[#allocation7 + $0xf0] sm:$0xff]
        %v870 = vld [vmem:[#allocation7 + $0xf8] sm:$0xff]
        %v871 = vld [vmem:[#allocation7 + $0x100] sm:$0xff]
        %v872 = vld [vmem:[#allocation7 + $0x108] sm:$0xff]
        %v873 = vld [vmem:[#allocation7 + $0x110] sm:$0xff]
        %v874 = vld [vmem:[#allocation7 + $0x118] sm:$0xff]
        %v875 = vld [vmem:[#allocation7 + $0x120] sm:$0xff]
        %v876 = vld [vmem:[#allocation7 + $0x128] sm:$0xff]
        %v877 = vld [vmem:[#allocation7 + $0x130] sm:$0xff]
        %v878 = vld [vmem:[#allocation7 + $0x138] sm:$0xff]
        %v879 = vld [vmem:[#allocation7 + $0x140] sm:$0xff]
        %v880 = vld [vmem:[#allocation7 + $0x148] sm:$0xff]
        %v881 = vld [vmem:[#allocation7 + $0x150] sm:$0xff]
        %v882 = vld [vmem:[#allocation7 + $0x158] sm:$0xff]
        %v883 = vld [vmem:[#allocation7 + $0x160] sm:$0xff]
        %v884 = vld [vmem:[#allocation7 + $0x168] sm:$0xff]
        %v885 = vld [vmem:[#allocation7 + $0x170] sm:$0xff]
        %v886 = vld [vmem:[#allocation7 + $0x178] sm:$0xff]
        %v887 = vld [vmem:[#allocation7 + $0x180] sm:$0xff]
        %v888 = vld [vmem:[#allocation7 + $0x188] sm:$0xff]
        %v889 = vld [vmem:[#allocation7 + $0x190] sm:$0xff]
        %v890 = vld [vmem:[#allocation7 + $0x198] sm:$0xff]
        %v891 = vld [vmem:[#allocation7 + $0x1a0] sm:$0xff]
        %v892 = vld [vmem:[#allocation7 + $0x1a8] sm:$0xff]
        %v893 = vld [vmem:[#allocation7 + $0x1b0] sm:$0xff]
        %v894 = vld [vmem:[#allocation7 + $0x1b8] sm:$0xff]
        %v895 = vld [vmem:[#allocation7 + $0x1c0] sm:$0xff]
        %v896 = vld [vmem:[#allocation7 + $0x1c8] sm:$0xff]
        %v897 = vld [vmem:[#allocation7 + $0x1d0] sm:$0xff]
        %v898 = vld [vmem:[#allocation7 + $0x1d8] sm:$0xff]
        %v899 = vld [vmem:[#allocation7 + $0x1e0] sm:$0xff]
        %v900 = vld [vmem:[#allocation7 + $0x1e8] sm:$0xff]
        %v901 = vld [vmem:[#allocation7 + $0x1f0] sm:$0xff]
        %v902 = vld [vmem:[#allocation7 + $0x1f8] sm:$0xff]
        %v903 = vld [vmem:[#allocation8] sm:$0xf]
        %v905 = vperm.slane %v903, 0
        %v906 = vperm.slane %v903, 1
        %v907 = vperm.slane %v903, 2
        %v908 = vperm.slane %v903, 3
        %v977 = vunpack.c.l.b16 %v839
        %v978 = vunpack.c.h.b16 %v839
        %v979 = vunpack.c.l.b16 %v840
        %v980 = vunpack.c.h.b16 %v840
        %v981 = vunpack.c.l.b16 %v841
        %v982 = vunpack.c.h.b16 %v841
        %v983 = vunpack.c.l.b16 %v842
        %v984 = vunpack.c.h.b16 %v842
        %v985 = vunpack.c.l.b16 %v843
        %v986 = vunpack.c.h.b16 %v843
        %v987 = vunpack.c.l.b16 %v844
        %v988 = vunpack.c.h.b16 %v844
        %v989 = vunpack.c.l.b16 %v845
        %v990 = vunpack.c.h.b16 %v845
        %v991 = vunpack.c.l.b16 %v846
        %v992 = vunpack.c.h.b16 %v846
        %v993 = vunpack.c.l.b16 %v847
        %v994 = vunpack.c.h.b16 %v847
        %v995 = vunpack.c.l.b16 %v848
        %v996 = vunpack.c.h.b16 %v848
        %v997 = vunpack.c.l.b16 %v849
        %v998 = vunpack.c.h.b16 %v849
        %v999 = vunpack.c.l.b16 %v850
        %v1000 = vunpack.c.h.b16 %v850
        %v1001 = vunpack.c.l.b16 %v851
        %v1002 = vunpack.c.h.b16 %v851
        %v1003 = vunpack.c.l.b16 %v852
        %v1004 = vunpack.c.h.b16 %v852
        %v1005 = vunpack.c.l.b16 %v853
        %v1006 = vunpack.c.h.b16 %v853
        %v1007 = vunpack.c.l.b16 %v854
        %v1008 = vunpack.c.h.b16 %v854
        %v1009 = vunpack.c.l.b16 %v855
        %v1010 = vunpack.c.h.b16 %v855
        %v1011 = vunpack.c.l.b16 %v856
        %v1012 = vunpack.c.h.b16 %v856
        %v1013 = vunpack.c.l.b16 %v857
        %v1014 = vunpack.c.h.b16 %v857
        %v1015 = vunpack.c.l.b16 %v858
        %v1016 = vunpack.c.h.b16 %v858
        %v1017 = vunpack.c.l.b16 %v859
        %v1018 = vunpack.c.h.b16 %v859
        %v1019 = vunpack.c.l.b16 %v860
        %v1020 = vunpack.c.h.b16 %v860
        %v1021 = vunpack.c.l.b16 %v861
        %v1022 = vunpack.c.h.b16 %v861
        %v1023 = vunpack.c.l.b16 %v862
        %v1024 = vunpack.c.h.b16 %v862
        %v1025 = vunpack.c.l.b16 %v863
        %v1026 = vunpack.c.h.b16 %v863
        %v1027 = vunpack.c.l.b16 %v864
        %v1028 = vunpack.c.h.b16 %v864
        %v1029 = vunpack.c.l.b16 %v865
        %v1030 = vunpack.c.h.b16 %v865
        %v1031 = vunpack.c.l.b16 %v866
        %v1032 = vunpack.c.h.b16 %v866
        %v1033 = vunpack.c.l.b16 %v867
        %v1034 = vunpack.c.h.b16 %v867
        %v1035 = vunpack.c.l.b16 %v868
        %v1036 = vunpack.c.h.b16 %v868
        %v1037 = vunpack.c.l.b16 %v869
        %v1038 = vunpack.c.h.b16 %v869
        %v1039 = vunpack.c.l.b16 %v870
        %v1040 = vunpack.c.h.b16 %v870
        %v1041 = vunpack.c.l.b16 %v871
        %v1042 = vunpack.c.h.b16 %v871
        %v1043 = vunpack.c.l.b16 %v872
        %v1044 = vunpack.c.h.b16 %v872
        %v1045 = vunpack.c.l.b16 %v873
        %v1046 = vunpack.c.h.b16 %v873
        %v1047 = vunpack.c.l.b16 %v874
        %v1048 = vunpack.c.h.b16 %v874
        %v1049 = vunpack.c.l.b16 %v875
        %v1050 = vunpack.c.h.b16 %v875
        %v1051 = vunpack.c.l.b16 %v876
        %v1052 = vunpack.c.h.b16 %v876
        %v1053 = vunpack.c.l.b16 %v877
        %v1054 = vunpack.c.h.b16 %v877
        %v1055 = vunpack.c.l.b16 %v878
        %v1056 = vunpack.c.h.b16 %v878
        %v1057 = vunpack.c.l.b16 %v879
        %v1058 = vunpack.c.h.b16 %v879
        %v1059 = vunpack.c.l.b16 %v880
        %v1060 = vunpack.c.h.b16 %v880
        %v1061 = vunpack.c.l.b16 %v881
        %v1062 = vunpack.c.h.b16 %v881
        %v1063 = vunpack.c.l.b16 %v882
        %v1064 = vunpack.c.h.b16 %v882
        %v1065 = vunpack.c.l.b16 %v883
        %v1066 = vunpack.c.h.b16 %v883
        %v1067 = vunpack.c.l.b16 %v884
        %v1068 = vunpack.c.h.b16 %v884
        %v1069 = vunpack.c.l.b16 %v885
        %v1070 = vunpack.c.h.b16 %v885
        %v1071 = vunpack.c.l.b16 %v886
        %v1072 = vunpack.c.h.b16 %v886
        %v1073 = vunpack.c.l.b16 %v887
        %v1074 = vunpack.c.h.b16 %v887
        %v1075 = vunpack.c.l.b16 %v888
        %v1076 = vunpack.c.h.b16 %v888
        %v1077 = vunpack.c.l.b16 %v889
        %v1078 = vunpack.c.h.b16 %v889
        %v1079 = vunpack.c.l.b16 %v890
        %v1080 = vunpack.c.h.b16 %v890
        %v1081 = vunpack.c.l.b16 %v891
        %v1082 = vunpack.c.h.b16 %v891
        %v1083 = vunpack.c.l.b16 %v892
        %v1084 = vunpack.c.h.b16 %v892
        %v1085 = vunpack.c.l.b16 %v893
        %v1086 = vunpack.c.h.b16 %v893
        %v1087 = vunpack.c.l.b16 %v894
        %v1088 = vunpack.c.h.b16 %v894
        %v1089 = vunpack.c.l.b16 %v895
        %v1090 = vunpack.c.h.b16 %v895
        %v1091 = vunpack.c.l.b16 %v896
        %v1092 = vunpack.c.h.b16 %v896
        %v1093 = vunpack.c.l.b16 %v897
        %v1094 = vunpack.c.h.b16 %v897
        %v1095 = vunpack.c.l.b16 %v898
        %v1096 = vunpack.c.h.b16 %v898
        %v1097 = vunpack.c.l.b16 %v899
        %v1098 = vunpack.c.h.b16 %v899
        %v1099 = vunpack.c.l.b16 %v900
        %v1100 = vunpack.c.h.b16 %v900
        %v1101 = vunpack.c.l.b16 %v901
        %v1102 = vunpack.c.h.b16 %v901
        %v1103 = vunpack.c.l.b16 %v902
        %v1104 = vunpack.c.h.b16 %v902
        %v1105 = vpack.c.b16 %v981, %v977
        %v1106 = vpack.c.b16 %v982, %v978
        %v1107 = vpack.c.b16 %v983, %v979
        %v1108 = vpack.c.b16 %v984, %v980
        %v1109 = vpack.c.b16 %v989, %v985
        %v1110 = vpack.c.b16 %v990, %v986
        %v1111 = vpack.c.b16 %v991, %v987
        %v1112 = vpack.c.b16 %v992, %v988
        %v1113 = vpack.c.b16 %v997, %v993
        %v1114 = vpack.c.b16 %v998, %v994
        %v1115 = vpack.c.b16 %v999, %v995
        %v1116 = vpack.c.b16 %v1000, %v996
        %v1117 = vpack.c.b16 %v1005, %v1001
        %v1118 = vpack.c.b16 %v1006, %v1002
        %v1119 = vpack.c.b16 %v1007, %v1003
        %v1120 = vpack.c.b16 %v1008, %v1004
        %v1121 = vpack.c.b16 %v1013, %v1009
        %v1122 = vpack.c.b16 %v1014, %v1010
        %v1123 = vpack.c.b16 %v1015, %v1011
        %v1124 = vpack.c.b16 %v1016, %v1012
        %v1125 = vpack.c.b16 %v1021, %v1017
        %v1126 = vpack.c.b16 %v1022, %v1018
        %v1127 = vpack.c.b16 %v1023, %v1019
        %v1128 = vpack.c.b16 %v1024, %v1020
        %v1129 = vpack.c.b16 %v1029, %v1025
        %v1130 = vpack.c.b16 %v1030, %v1026
        %v1131 = vpack.c.b16 %v1031, %v1027
        %v1132 = vpack.c.b16 %v1032, %v1028
        %v1133 = vpack.c.b16 %v1037, %v1033
        %v1134 = vpack.c.b16 %v1038, %v1034
        %v1135 = vpack.c.b16 %v1039, %v1035
        %v1136 = vpack.c.b16 %v1040, %v1036
        %v1137 = vpack.c.b16 %v1045, %v1041
        %v1138 = vpack.c.b16 %v1046, %v1042
        %v1139 = vpack.c.b16 %v1047, %v1043
        %v1140 = vpack.c.b16 %v1048, %v1044
        %v1141 = vpack.c.b16 %v1053, %v1049
        %v1142 = vpack.c.b16 %v1054, %v1050
        %v1143 = vpack.c.b16 %v1055, %v1051
        %v1144 = vpack.c.b16 %v1056, %v1052
        %v1145 = vpack.c.b16 %v1061, %v1057
        %v1146 = vpack.c.b16 %v1062, %v1058
        %v1147 = vpack.c.b16 %v1063, %v1059
        %v1148 = vpack.c.b16 %v1064, %v1060
        %v1149 = vpack.c.b16 %v1069, %v1065
        %v1150 = vpack.c.b16 %v1070, %v1066
        %v1151 = vpack.c.b16 %v1071, %v1067
        %v1152 = vpack.c.b16 %v1072, %v1068
        %v1153 = vpack.c.b16 %v1077, %v1073
        %v1154 = vpack.c.b16 %v1078, %v1074
        %v1155 = vpack.c.b16 %v1079, %v1075
        %v1156 = vpack.c.b16 %v1080, %v1076
        %v1157 = vpack.c.b16 %v1085, %v1081
        %v1158 = vpack.c.b16 %v1086, %v1082
        %v1159 = vpack.c.b16 %v1087, %v1083
        %v1160 = vpack.c.b16 %v1088, %v1084
        %v1161 = vpack.c.b16 %v1093, %v1089
        %v1162 = vpack.c.b16 %v1094, %v1090
        %v1163 = vpack.c.b16 %v1095, %v1091
        %v1164 = vpack.c.b16 %v1096, %v1092
        %v1165 = vpack.c.b16 %v1101, %v1097
        %v1166 = vpack.c.b16 %v1102, %v1098
        %v1167 = vpack.c.b16 %v1103, %v1099
        %v1168 = vpack.c.b16 %v1104, %v1100
        %1233 = vmatpush.bf16.msra.mxu0 %v1133
        %1234 = vmatpush.bf16.msra.mxu0 %v1129
        %1235 = vmatpush.bf16.msra.mxu0 %v1125
        %1236 = vmatpush.bf16.msra.mxu0 %v1121
        %1237 = vmatpush.bf16.msra.mxu0 %v1117
        %1238 = vmatpush.bf16.msra.mxu0 %v1113
        %1239 = vmatpush.bf16.msra.mxu0 %v1109
        %1240 = vmatpush.bf16.msra.mxu0 %v1105
        %1241 = vmatmul.bf16.gmra.mxu0 %v823
        %v1242 = vpop.f32.mrf.mxu0
        %v1243 = vadd.f32 %v905, %v1242
        %v1244 = vpop.f32.mrf.mxu0
        %v1245 = vadd.f32 %v905, %v1244
        %1246 = vmatmul.bf16.gmra.mxu0 %v825
        %v1247 = vpop.f32.mrf.mxu0
        %v1248 = vadd.f32 %v905, %v1247
        %v1249 = vpop.f32.mrf.mxu0
        %v1250 = vadd.f32 %v905, %v1249
        %1251 = vmatmul.bf16.gmra.mxu0 %v827
        %v1252 = vpop.f32.mrf.mxu0
        %v1253 = vadd.f32 %v905, %v1252
        %v1254 = vpop.f32.mrf.mxu0
        %v1255 = vadd.f32 %v905, %v1254
        %1256 = vmatmul.bf16.gmra.mxu0 %v829
        %v1257 = vpop.f32.mrf.mxu0
        %v1258 = vadd.f32 %v905, %v1257
        %v1259 = vpop.f32.mrf.mxu0
        %v1260 = vadd.f32 %v905, %v1259
        %1261 = vmatmul.bf16.gmra.mxu0 %v831
        %v1262 = vpop.f32.mrf.mxu0
        %v1263 = vadd.f32 %v905, %v1262
        %v1264 = vpop.f32.mrf.mxu0
        %v1265 = vadd.f32 %v905, %v1264
        %1266 = vmatmul.bf16.gmra.mxu0 %v833
        %v1267 = vpop.f32.mrf.mxu0
        %v1268 = vadd.f32 %v905, %v1267
        %v1269 = vpop.f32.mrf.mxu0
        %v1270 = vadd.f32 %v905, %v1269
        %1271 = vmatmul.bf16.gmra.mxu0 %v835
        %v1272 = vpop.f32.mrf.mxu0
        %v1273 = vadd.f32 %v905, %v1272
        %v1274 = vpop.f32.mrf.mxu0
        %v1275 = vadd.f32 %v905, %v1274
        %1276 = vmatmul.bf16.gmra.mxu0 %v837
        %v1277 = vpop.f32.mrf.mxu0
        %v1278 = vadd.f32 %v905, %v1277
        %v1279 = vpop.f32.mrf.mxu0
        %v1280 = vadd.f32 %v905, %v1279
        %1281 = vdwg.mxu0
        %1282 = vmatpush.bf16.msra.mxu0 %v1165
        %1283 = vmatpush.bf16.msra.mxu0 %v1161
        %1284 = vmatpush.bf16.msra.mxu0 %v1157
        %1285 = vmatpush.bf16.msra.mxu0 %v1153
        %1286 = vmatpush.bf16.msra.mxu0 %v1149
        %1287 = vmatpush.bf16.msra.mxu0 %v1145
        %1288 = vmatpush.bf16.msra.mxu0 %v1141
        %1289 = vmatpush.bf16.msra.mxu0 %v1137
        %1290 = vmatmul.bf16.gmra.mxu0 %v824
        %v1291 = vpop.f32.mrf.mxu0
        %v1292 = vadd.f32 %v1243, %v1291
        %v1293 = vpop.f32.mrf.mxu0
        %v1294 = vadd.f32 %v1245, %v1293
        %1295 = vmatmul.bf16.gmra.mxu0 %v826
        %v1296 = vpop.f32.mrf.mxu0
        %v1297 = vadd.f32 %v1248, %v1296
        %v1298 = vpop.f32.mrf.mxu0
        %v1299 = vadd.f32 %v1250, %v1298
        %1300 = vmatmul.bf16.gmra.mxu0 %v828
        %v1301 = vpop.f32.mrf.mxu0
        %v1302 = vadd.f32 %v1253, %v1301
        %v1303 = vpop.f32.mrf.mxu0
        %v1304 = vadd.f32 %v1255, %v1303
        %1305 = vmatmul.bf16.gmra.mxu0 %v830
        %v1306 = vpop.f32.mrf.mxu0
        %v1307 = vadd.f32 %v1258, %v1306
        %v1308 = vpop.f32.mrf.mxu0
        %v1309 = vadd.f32 %v1260, %v1308
        %1310 = vmatmul.bf16.gmra.mxu0 %v832
        %v1311 = vpop.f32.mrf.mxu0
        %v1312 = vadd.f32 %v1263, %v1311
        %v1313 = vpop.f32.mrf.mxu0
        %v1314 = vadd.f32 %v1265, %v1313
        %1315 = vmatmul.bf16.gmra.mxu0 %v834
        %v1316 = vpop.f32.mrf.mxu0
        %v1317 = vadd.f32 %v1268, %v1316
        %v1318 = vpop.f32.mrf.mxu0
        %v1319 = vadd.f32 %v1270, %v1318
        %1320 = vmatmul.bf16.gmra.mxu0 %v836
        %v1321 = vpop.f32.mrf.mxu0
        %v1322 = vadd.f32 %v1273, %v1321
        %v1323 = vpop.f32.mrf.mxu0
        %v1324 = vadd.f32 %v1275, %v1323
        %1325 = vmatmul.bf16.gmra.mxu0 %v838
        %v1326 = vpop.f32.mrf.mxu0
        %v1327 = vadd.f32 %v1278, %v1326
        %v1328 = vpop.f32.mrf.mxu0
        %v1329 = vadd.f32 %v1280, %v1328
        %1330 = vdwg.mxu0
        %1331 = vmatpush.bf16.msra.mxu0 %v1134
        %1332 = vmatpush.bf16.msra.mxu0 %v1130
        %1333 = vmatpush.bf16.msra.mxu0 %v1126
        %1334 = vmatpush.bf16.msra.mxu0 %v1122
        %1335 = vmatpush.bf16.msra.mxu0 %v1118
        %1336 = vmatpush.bf16.msra.mxu0 %v1114
        %1337 = vmatpush.bf16.msra.mxu0 %v1110
        %1338 = vmatpush.bf16.msra.mxu0 %v1106
        %1339 = vmatmul.bf16.gmra.mxu0 %v823
        %v1340 = vpop.f32.mrf.mxu0
        %v1341 = vadd.f32 %v906, %v1340
        %v1342 = vpop.f32.mrf.mxu0
        %v1343 = vadd.f32 %v906, %v1342
        %1344 = vmatmul.bf16.gmra.mxu0 %v825
        %v1345 = vpop.f32.mrf.mxu0
        %v1346 = vadd.f32 %v906, %v1345
        %v1347 = vpop.f32.mrf.mxu0
        %v1348 = vadd.f32 %v906, %v1347
        %1349 = vmatmul.bf16.gmra.mxu0 %v827
        %v1350 = vpop.f32.mrf.mxu0
        %v1351 = vadd.f32 %v906, %v1350
        %v1352 = vpop.f32.mrf.mxu0
        %v1353 = vadd.f32 %v906, %v1352
        %1354 = vmatmul.bf16.gmra.mxu0 %v829
        %v1355 = vpop.f32.mrf.mxu0
        %v1356 = vadd.f32 %v906, %v1355
        %v1357 = vpop.f32.mrf.mxu0
        %v1358 = vadd.f32 %v906, %v1357
        %1359 = vmatmul.bf16.gmra.mxu0 %v831
        %v1360 = vpop.f32.mrf.mxu0
        %v1361 = vadd.f32 %v906, %v1360
        %v1362 = vpop.f32.mrf.mxu0
        %v1363 = vadd.f32 %v906, %v1362
        %1364 = vmatmul.bf16.gmra.mxu0 %v833
        %v1365 = vpop.f32.mrf.mxu0
        %v1366 = vadd.f32 %v906, %v1365
        %v1367 = vpop.f32.mrf.mxu0
        %v1368 = vadd.f32 %v906, %v1367
        %1369 = vmatmul.bf16.gmra.mxu0 %v835
        %v1370 = vpop.f32.mrf.mxu0
        %v1371 = vadd.f32 %v906, %v1370
        %v1372 = vpop.f32.mrf.mxu0
        %v1373 = vadd.f32 %v906, %v1372
        %1374 = vmatmul.bf16.gmra.mxu0 %v837
        %v1375 = vpop.f32.mrf.mxu0
        %v1376 = vadd.f32 %v906, %v1375
        %v1377 = vpop.f32.mrf.mxu0
        %v1378 = vadd.f32 %v906, %v1377
        %1379 = vdwg.mxu0
        %1380 = vmatpush.bf16.msra.mxu0 %v1166
        %1381 = vmatpush.bf16.msra.mxu0 %v1162
        %1382 = vmatpush.bf16.msra.mxu0 %v1158
        %1383 = vmatpush.bf16.msra.mxu0 %v1154
        %1384 = vmatpush.bf16.msra.mxu0 %v1150
        %1385 = vmatpush.bf16.msra.mxu0 %v1146
        %1386 = vmatpush.bf16.msra.mxu0 %v1142
        %1387 = vmatpush.bf16.msra.mxu0 %v1138
        %1388 = vmatmul.bf16.gmra.mxu0 %v824
        %v1389 = vpop.f32.mrf.mxu0
        %v1390 = vadd.f32 %v1341, %v1389
        %v1391 = vpop.f32.mrf.mxu0
        %v1392 = vadd.f32 %v1343, %v1391
        %1393 = vmatmul.bf16.gmra.mxu0 %v826
        %v1394 = vpop.f32.mrf.mxu0
        %v1395 = vadd.f32 %v1346, %v1394
        %v1396 = vpop.f32.mrf.mxu0
        %v1397 = vadd.f32 %v1348, %v1396
        %1398 = vmatmul.bf16.gmra.mxu0 %v828
        %v1399 = vpop.f32.mrf.mxu0
        %v1400 = vadd.f32 %v1351, %v1399
        %v1401 = vpop.f32.mrf.mxu0
        %v1402 = vadd.f32 %v1353, %v1401
        %1403 = vmatmul.bf16.gmra.mxu0 %v830
        %v1404 = vpop.f32.mrf.mxu0
        %v1405 = vadd.f32 %v1356, %v1404
        %v1406 = vpop.f32.mrf.mxu0
        %v1407 = vadd.f32 %v1358, %v1406
        %1408 = vmatmul.bf16.gmra.mxu0 %v832
        %v1409 = vpop.f32.mrf.mxu0
        %v1410 = vadd.f32 %v1361, %v1409
        %v1411 = vpop.f32.mrf.mxu0
        %v1412 = vadd.f32 %v1363, %v1411
        %1413 = vmatmul.bf16.gmra.mxu0 %v834
        %v1414 = vpop.f32.mrf.mxu0
        %v1415 = vadd.f32 %v1366, %v1414
        %v1416 = vpop.f32.mrf.mxu0
        %v1417 = vadd.f32 %v1368, %v1416
        %1418 = vmatmul.bf16.gmra.mxu0 %v836
        %v1419 = vpop.f32.mrf.mxu0
        %v1420 = vadd.f32 %v1371, %v1419
        %v1421 = vpop.f32.mrf.mxu0
        %v1422 = vadd.f32 %v1373, %v1421
        %1423 = vmatmul.bf16.gmra.mxu0 %v838
        %v1424 = vpop.f32.mrf.mxu0
        %v1425 = vadd.f32 %v1376, %v1424
        %v1426 = vpop.f32.mrf.mxu0
        %v1427 = vadd.f32 %v1378, %v1426
        %1428 = vdwg.mxu0
        %1429 = vmatpush.bf16.msra.mxu0 %v1135
        %1430 = vmatpush.bf16.msra.mxu0 %v1131
        %1431 = vmatpush.bf16.msra.mxu0 %v1127
        %1432 = vmatpush.bf16.msra.mxu0 %v1123
        %1433 = vmatpush.bf16.msra.mxu0 %v1119
        %1434 = vmatpush.bf16.msra.mxu0 %v1115
        %1435 = vmatpush.bf16.msra.mxu0 %v1111
        %1436 = vmatpush.bf16.msra.mxu0 %v1107
        %1437 = vmatmul.bf16.gmra.mxu0 %v823
        %v1438 = vpop.f32.mrf.mxu0
        %v1439 = vadd.f32 %v907, %v1438
        %v1440 = vpop.f32.mrf.mxu0
        %v1441 = vadd.f32 %v907, %v1440
        %1442 = vmatmul.bf16.gmra.mxu0 %v825
        %v1443 = vpop.f32.mrf.mxu0
        %v1444 = vadd.f32 %v907, %v1443
        %v1445 = vpop.f32.mrf.mxu0
        %v1446 = vadd.f32 %v907, %v1445
        %1447 = vmatmul.bf16.gmra.mxu0 %v827
        %v1448 = vpop.f32.mrf.mxu0
        %v1449 = vadd.f32 %v907, %v1448
        %v1450 = vpop.f32.mrf.mxu0
        %v1451 = vadd.f32 %v907, %v1450
        %1452 = vmatmul.bf16.gmra.mxu0 %v829
        %v1453 = vpop.f32.mrf.mxu0
        %v1454 = vadd.f32 %v907, %v1453
        %v1455 = vpop.f32.mrf.mxu0
        %v1456 = vadd.f32 %v907, %v1455
        %1457 = vmatmul.bf16.gmra.mxu0 %v831
        %v1458 = vpop.f32.mrf.mxu0
        %v1459 = vadd.f32 %v907, %v1458
        %v1460 = vpop.f32.mrf.mxu0
        %v1461 = vadd.f32 %v907, %v1460
        %1462 = vmatmul.bf16.gmra.mxu0 %v833
        %v1463 = vpop.f32.mrf.mxu0
        %v1464 = vadd.f32 %v907, %v1463
        %v1465 = vpop.f32.mrf.mxu0
        %v1466 = vadd.f32 %v907, %v1465
        %1467 = vmatmul.bf16.gmra.mxu0 %v835
        %v1468 = vpop.f32.mrf.mxu0
        %v1469 = vadd.f32 %v907, %v1468
        %v1470 = vpop.f32.mrf.mxu0
        %v1471 = vadd.f32 %v907, %v1470
        %1472 = vmatmul.bf16.gmra.mxu0 %v837
        %v1473 = vpop.f32.mrf.mxu0
        %v1474 = vadd.f32 %v907, %v1473
        %v1475 = vpop.f32.mrf.mxu0
        %v1476 = vadd.f32 %v907, %v1475
        %1477 = vdwg.mxu0
        %1478 = vmatpush.bf16.msra.mxu0 %v1167
        %1479 = vmatpush.bf16.msra.mxu0 %v1163
        %1480 = vmatpush.bf16.msra.mxu0 %v1159
        %1481 = vmatpush.bf16.msra.mxu0 %v1155
        %1482 = vmatpush.bf16.msra.mxu0 %v1151
        %1483 = vmatpush.bf16.msra.mxu0 %v1147
        %1484 = vmatpush.bf16.msra.mxu0 %v1143
        %1485 = vmatpush.bf16.msra.mxu0 %v1139
        %1486 = vmatmul.bf16.gmra.mxu0 %v824
        %v1487 = vpop.f32.mrf.mxu0
        %v1488 = vadd.f32 %v1439, %v1487
        %v1489 = vpop.f32.mrf.mxu0
        %v1490 = vadd.f32 %v1441, %v1489
        %1491 = vmatmul.bf16.gmra.mxu0 %v826
        %v1492 = vpop.f32.mrf.mxu0
        %v1493 = vadd.f32 %v1444, %v1492
        %v1494 = vpop.f32.mrf.mxu0
        %v1495 = vadd.f32 %v1446, %v1494
        %1496 = vmatmul.bf16.gmra.mxu0 %v828
        %v1497 = vpop.f32.mrf.mxu0
        %v1498 = vadd.f32 %v1449, %v1497
        %v1499 = vpop.f32.mrf.mxu0
        %v1500 = vadd.f32 %v1451, %v1499
        %1501 = vmatmul.bf16.gmra.mxu0 %v830
        %v1502 = vpop.f32.mrf.mxu0
        %v1503 = vadd.f32 %v1454, %v1502
        %v1504 = vpop.f32.mrf.mxu0
        %v1505 = vadd.f32 %v1456, %v1504
        %1506 = vmatmul.bf16.gmra.mxu0 %v832
        %v1507 = vpop.f32.mrf.mxu0
        %v1508 = vadd.f32 %v1459, %v1507
        %v1509 = vpop.f32.mrf.mxu0
        %v1510 = vadd.f32 %v1461, %v1509
        %1511 = vmatmul.bf16.gmra.mxu0 %v834
        %v1512 = vpop.f32.mrf.mxu0
        %v1513 = vadd.f32 %v1464, %v1512
        %v1514 = vpop.f32.mrf.mxu0
        %v1515 = vadd.f32 %v1466, %v1514
        %1516 = vmatmul.bf16.gmra.mxu0 %v836
        %v1517 = vpop.f32.mrf.mxu0
        %v1518 = vadd.f32 %v1469, %v1517
        %v1519 = vpop.f32.mrf.mxu0
        %v1520 = vadd.f32 %v1471, %v1519
        %1521 = vmatmul.bf16.gmra.mxu0 %v838
        %v1522 = vpop.f32.mrf.mxu0
        %v1523 = vadd.f32 %v1474, %v1522
        %v1524 = vpop.f32.mrf.mxu0
        %v1525 = vadd.f32 %v1476, %v1524
        %1526 = vdwg.mxu0
        %1527 = vmatpush.bf16.msra.mxu0 %v1136
        %1528 = vmatpush.bf16.msra.mxu0 %v1132
        %1529 = vmatpush.bf16.msra.mxu0 %v1128
        %1530 = vmatpush.bf16.msra.mxu0 %v1124
        %1531 = vmatpush.bf16.msra.mxu0 %v1120
        %1532 = vmatpush.bf16.msra.mxu0 %v1116
        %1533 = vmatpush.bf16.msra.mxu0 %v1112
        %1534 = vmatpush.bf16.msra.mxu0 %v1108
        %1535 = vmatmul.bf16.gmra.mxu0 %v823
        %v1536 = vpop.f32.mrf.mxu0
        %v1537 = vadd.f32 %v908, %v1536
        %v1538 = vpop.f32.mrf.mxu0
        %v1539 = vadd.f32 %v908, %v1538
        %1540 = vmatmul.bf16.gmra.mxu0 %v825
        %v1541 = vpop.f32.mrf.mxu0
        %v1542 = vadd.f32 %v908, %v1541
        %v1543 = vpop.f32.mrf.mxu0
        %v1544 = vadd.f32 %v908, %v1543
        %1545 = vmatmul.bf16.gmra.mxu0 %v827
        %v1546 = vpop.f32.mrf.mxu0
        %v1547 = vadd.f32 %v908, %v1546
        %v1548 = vpop.f32.mrf.mxu0
        %v1549 = vadd.f32 %v908, %v1548
        %1550 = vmatmul.bf16.gmra.mxu0 %v829
        %v1551 = vpop.f32.mrf.mxu0
        %v1552 = vadd.f32 %v908, %v1551
        %v1553 = vpop.f32.mrf.mxu0
        %v1554 = vadd.f32 %v908, %v1553
        %1555 = vmatmul.bf16.gmra.mxu0 %v831
        %v1556 = vpop.f32.mrf.mxu0
        %v1557 = vadd.f32 %v908, %v1556
        %v1558 = vpop.f32.mrf.mxu0
        %v1559 = vadd.f32 %v908, %v1558
        %1560 = vmatmul.bf16.gmra.mxu0 %v833
        %v1561 = vpop.f32.mrf.mxu0
        %v1562 = vadd.f32 %v908, %v1561
        %v1563 = vpop.f32.mrf.mxu0
        %v1564 = vadd.f32 %v908, %v1563
        %1565 = vmatmul.bf16.gmra.mxu0 %v835
        %v1566 = vpop.f32.mrf.mxu0
        %v1567 = vadd.f32 %v908, %v1566
        %v1568 = vpop.f32.mrf.mxu0
        %v1569 = vadd.f32 %v908, %v1568
        %1570 = vmatmul.bf16.gmra.mxu0 %v837
        %v1571 = vpop.f32.mrf.mxu0
        %v1572 = vadd.f32 %v908, %v1571
        %v1573 = vpop.f32.mrf.mxu0
        %v1574 = vadd.f32 %v908, %v1573
        %1575 = vdwg.mxu0
        %1576 = vmatpush.bf16.msra.mxu0 %v1168
        %1577 = vmatpush.bf16.msra.mxu0 %v1164
        %1578 = vmatpush.bf16.msra.mxu0 %v1160
        %1579 = vmatpush.bf16.msra.mxu0 %v1156
        %1580 = vmatpush.bf16.msra.mxu0 %v1152
        %1581 = vmatpush.bf16.msra.mxu0 %v1148
        %1582 = vmatpush.bf16.msra.mxu0 %v1144
        %1583 = vmatpush.bf16.msra.mxu0 %v1140
        %1584 = vmatmul.bf16.gmra.mxu0 %v824
        %v1585 = vpop.f32.mrf.mxu0
        %v1586 = vadd.f32 %v1537, %v1585
        %v1587 = vpop.f32.mrf.mxu0
        %v1588 = vadd.f32 %v1539, %v1587
        %1589 = vmatmul.bf16.gmra.mxu0 %v826
        %v1590 = vpop.f32.mrf.mxu0
        %v1591 = vadd.f32 %v1542, %v1590
        %v1592 = vpop.f32.mrf.mxu0
        %v1593 = vadd.f32 %v1544, %v1592
        %1594 = vmatmul.bf16.gmra.mxu0 %v828
        %v1595 = vpop.f32.mrf.mxu0
        %v1596 = vadd.f32 %v1547, %v1595
        %v1597 = vpop.f32.mrf.mxu0
        %v1598 = vadd.f32 %v1549, %v1597
        %1599 = vmatmul.bf16.gmra.mxu0 %v830
        %v1600 = vpop.f32.mrf.mxu0
        %v1601 = vadd.f32 %v1552, %v1600
        %v1602 = vpop.f32.mrf.mxu0
        %v1603 = vadd.f32 %v1554, %v1602
        %1604 = vmatmul.bf16.gmra.mxu0 %v832
        %v1605 = vpop.f32.mrf.mxu0
        %v1606 = vadd.f32 %v1557, %v1605
        %v1607 = vpop.f32.mrf.mxu0
        %v1608 = vadd.f32 %v1559, %v1607
        %1609 = vmatmul.bf16.gmra.mxu0 %v834
        %v1610 = vpop.f32.mrf.mxu0
        %v1611 = vadd.f32 %v1562, %v1610
        %v1612 = vpop.f32.mrf.mxu0
        %v1613 = vadd.f32 %v1564, %v1612
        %1614 = vmatmul.bf16.gmra.mxu0 %v836
        %v1615 = vpop.f32.mrf.mxu0
        %v1616 = vadd.f32 %v1567, %v1615
        %v1617 = vpop.f32.mrf.mxu0
        %v1618 = vadd.f32 %v1569, %v1617
        %1619 = vmatmul.bf16.gmra.mxu0 %v838
        %v1620 = vpop.f32.mrf.mxu0
        %v1621 = vadd.f32 %v1572, %v1620
        %v1622 = vpop.f32.mrf.mxu0
        %v1623 = vadd.f32 %v1574, %v1622
        %1624 = vdwg.mxu0
        %vm1625 = vcmp.gt.f32.partialorder %v1292, 0.0
        %vm1626 = vcmp.gt.f32.partialorder %v1390, 0.0
        %vm1627 = vcmp.gt.f32.partialorder %v1488, 0.0
        %vm1628 = vcmp.gt.f32.partialorder %v1586, 0.0
        %vm1629 = vcmp.gt.f32.partialorder %v1294, 0.0
        %vm1630 = vcmp.gt.f32.partialorder %v1392, 0.0
        %vm1631 = vcmp.gt.f32.partialorder %v1490, 0.0
        %vm1632 = vcmp.gt.f32.partialorder %v1588, 0.0
        %vm1633 = vcmp.gt.f32.partialorder %v1297, 0.0
        %vm1634 = vcmp.gt.f32.partialorder %v1395, 0.0
        %vm1635 = vcmp.gt.f32.partialorder %v1493, 0.0
        %vm1636 = vcmp.gt.f32.partialorder %v1591, 0.0
        %vm1637 = vcmp.gt.f32.partialorder %v1299, 0.0
        %vm1638 = vcmp.gt.f32.partialorder %v1397, 0.0
        %vm1639 = vcmp.gt.f32.partialorder %v1495, 0.0
        %vm1640 = vcmp.gt.f32.partialorder %v1593, 0.0
        %vm1641 = vcmp.gt.f32.partialorder %v1302, 0.0
        %vm1642 = vcmp.gt.f32.partialorder %v1400, 0.0
        %vm1643 = vcmp.gt.f32.partialorder %v1498, 0.0
        %vm1644 = vcmp.gt.f32.partialorder %v1596, 0.0
        %vm1645 = vcmp.gt.f32.partialorder %v1304, 0.0
        %vm1646 = vcmp.gt.f32.partialorder %v1402, 0.0
        %vm1647 = vcmp.gt.f32.partialorder %v1500, 0.0
        %vm1648 = vcmp.gt.f32.partialorder %v1598, 0.0
        %vm1649 = vcmp.gt.f32.partialorder %v1307, 0.0
        %vm1650 = vcmp.gt.f32.partialorder %v1405, 0.0
        %vm1651 = vcmp.gt.f32.partialorder %v1503, 0.0
        %vm1652 = vcmp.gt.f32.partialorder %v1601, 0.0
        %vm1653 = vcmp.gt.f32.partialorder %v1309, 0.0
        %vm1654 = vcmp.gt.f32.partialorder %v1407, 0.0
        %vm1655 = vcmp.gt.f32.partialorder %v1505, 0.0
        %vm1656 = vcmp.gt.f32.partialorder %v1603, 0.0
        %vm1657 = vcmp.gt.f32.partialorder %v1312, 0.0
        %vm1658 = vcmp.gt.f32.partialorder %v1410, 0.0
        %vm1659 = vcmp.gt.f32.partialorder %v1508, 0.0
        %vm1660 = vcmp.gt.f32.partialorder %v1606, 0.0
        %vm1661 = vcmp.gt.f32.partialorder %v1314, 0.0
        %vm1662 = vcmp.gt.f32.partialorder %v1412, 0.0
        %vm1663 = vcmp.gt.f32.partialorder %v1510, 0.0
        %vm1664 = vcmp.gt.f32.partialorder %v1608, 0.0
        %vm1665 = vcmp.gt.f32.partialorder %v1317, 0.0
        %vm1666 = vcmp.gt.f32.partialorder %v1415, 0.0
        %vm1667 = vcmp.gt.f32.partialorder %v1513, 0.0
        %vm1668 = vcmp.gt.f32.partialorder %v1611, 0.0
        %vm1669 = vcmp.gt.f32.partialorder %v1319, 0.0
        %vm1670 = vcmp.gt.f32.partialorder %v1417, 0.0
        %vm1671 = vcmp.gt.f32.partialorder %v1515, 0.0
        %vm1672 = vcmp.gt.f32.partialorder %v1613, 0.0
        %vm1673 = vcmp.gt.f32.partialorder %v1322, 0.0
        %vm1674 = vcmp.gt.f32.partialorder %v1420, 0.0
        %vm1675 = vcmp.gt.f32.partialorder %v1518, 0.0
        %vm1676 = vcmp.gt.f32.partialorder %v1616, 0.0
        %vm1677 = vcmp.gt.f32.partialorder %v1324, 0.0
        %vm1678 = vcmp.gt.f32.partialorder %v1422, 0.0
        %vm1679 = vcmp.gt.f32.partialorder %v1520, 0.0
        %vm1680 = vcmp.gt.f32.partialorder %v1618, 0.0
        %vm1681 = vcmp.gt.f32.partialorder %v1327, 0.0
        %vm1682 = vcmp.gt.f32.partialorder %v1425, 0.0
        %vm1683 = vcmp.gt.f32.partialorder %v1523, 0.0
        %vm1684 = vcmp.gt.f32.partialorder %v1621, 0.0
        %vm1685 = vcmp.gt.f32.partialorder %v1329, 0.0
        %vm1686 = vcmp.gt.f32.partialorder %v1427, 0.0
        %vm1687 = vcmp.gt.f32.partialorder %v1525, 0.0
        %vm1688 = vcmp.gt.f32.partialorder %v1623, 0.0
        %v1689 = vmul.f32 %v1292, 0.01
        %v1690 = vmul.f32 %v1390, 0.01
        %v1691 = vmul.f32 %v1488, 0.01
        %v1692 = vmul.f32 %v1586, 0.01
        %v1693 = vmul.f32 %v1294, 0.01
        %v1694 = vmul.f32 %v1392, 0.01
        %v1695 = vmul.f32 %v1490, 0.01
        %v1696 = vmul.f32 %v1588, 0.01
        %v1697 = vmul.f32 %v1297, 0.01
        %v1698 = vmul.f32 %v1395, 0.01
        %v1699 = vmul.f32 %v1493, 0.01
        %v1700 = vmul.f32 %v1591, 0.01
        %v1701 = vmul.f32 %v1299, 0.01
        %v1702 = vmul.f32 %v1397, 0.01
        %v1703 = vmul.f32 %v1495, 0.01
        %v1704 = vmul.f32 %v1593, 0.01
        %v1705 = vmul.f32 %v1302, 0.01
        %v1706 = vmul.f32 %v1400, 0.01
        %v1707 = vmul.f32 %v1498, 0.01
        %v1708 = vmul.f32 %v1596, 0.01
        %v1709 = vmul.f32 %v1304, 0.01
        %v1710 = vmul.f32 %v1402, 0.01
        %v1711 = vmul.f32 %v1500, 0.01
        %v1712 = vmul.f32 %v1598, 0.01
        %v1713 = vmul.f32 %v1307, 0.01
        %v1714 = vmul.f32 %v1405, 0.01
        %v1715 = vmul.f32 %v1503, 0.01
        %v1716 = vmul.f32 %v1601, 0.01
        %v1717 = vmul.f32 %v1309, 0.01
        %v1718 = vmul.f32 %v1407, 0.01
        %v1719 = vmul.f32 %v1505, 0.01
        %v1720 = vmul.f32 %v1603, 0.01
        %v1721 = vmul.f32 %v1312, 0.01
        %v1722 = vmul.f32 %v1410, 0.01
        %v1723 = vmul.f32 %v1508, 0.01
        %v1724 = vmul.f32 %v1606, 0.01
        %v1725 = vmul.f32 %v1314, 0.01
        %v1726 = vmul.f32 %v1412, 0.01
        %v1727 = vmul.f32 %v1510, 0.01
        %v1728 = vmul.f32 %v1608, 0.01
        %v1729 = vmul.f32 %v1317, 0.01
        %v1730 = vmul.f32 %v1415, 0.01
        %v1731 = vmul.f32 %v1513, 0.01
        %v1732 = vmul.f32 %v1611, 0.01
        %v1733 = vmul.f32 %v1319, 0.01
        %v1734 = vmul.f32 %v1417, 0.01
        %v1735 = vmul.f32 %v1515, 0.01
        %v1736 = vmul.f32 %v1613, 0.01
        %v1737 = vmul.f32 %v1322, 0.01
        %v1738 = vmul.f32 %v1420, 0.01
        %v1739 = vmul.f32 %v1518, 0.01
        %v1740 = vmul.f32 %v1616, 0.01
        %v1741 = vmul.f32 %v1324, 0.01
        %v1742 = vmul.f32 %v1422, 0.01
        %v1743 = vmul.f32 %v1520, 0.01
        %v1744 = vmul.f32 %v1618, 0.01
        %v1745 = vmul.f32 %v1327, 0.01
        %v1746 = vmul.f32 %v1425, 0.01
        %v1747 = vmul.f32 %v1523, 0.01
        %v1748 = vmul.f32 %v1621, 0.01
        %v1749 = vmul.f32 %v1329, 0.01
        %v1750 = vmul.f32 %v1427, 0.01
        %v1751 = vmul.f32 %v1525, 0.01
        %v1752 = vmul.f32 %v1623, 0.01
        %v1753 = vsel %vm1625, %v1292, %v1689
        %v1754 = vsel %vm1626, %v1390, %v1690
        %v1755 = vsel %vm1627, %v1488, %v1691
        %v1756 = vsel %vm1628, %v1586, %v1692
        %v1757 = vsel %vm1629, %v1294, %v1693
        %v1758 = vsel %vm1630, %v1392, %v1694
        %v1759 = vsel %vm1631, %v1490, %v1695
        %v1760 = vsel %vm1632, %v1588, %v1696
        %v1761 = vsel %vm1633, %v1297, %v1697
        %v1762 = vsel %vm1634, %v1395, %v1698
        %v1763 = vsel %vm1635, %v1493, %v1699
        %v1764 = vsel %vm1636, %v1591, %v1700
        %v1765 = vsel %vm1637, %v1299, %v1701
        %v1766 = vsel %vm1638, %v1397, %v1702
        %v1767 = vsel %vm1639, %v1495, %v1703
        %v1768 = vsel %vm1640, %v1593, %v1704
        %v1769 = vsel %vm1641, %v1302, %v1705
        %v1770 = vsel %vm1642, %v1400, %v1706
        %v1771 = vsel %vm1643, %v1498, %v1707
        %v1772 = vsel %vm1644, %v1596, %v1708
        %v1773 = vsel %vm1645, %v1304, %v1709
        %v1774 = vsel %vm1646, %v1402, %v1710
        %v1775 = vsel %vm1647, %v1500, %v1711
        %v1776 = vsel %vm1648, %v1598, %v1712
        %v1777 = vsel %vm1649, %v1307, %v1713
        %v1778 = vsel %vm1650, %v1405, %v1714
        %v1779 = vsel %vm1651, %v1503, %v1715
        %v1780 = vsel %vm1652, %v1601, %v1716
        %v1781 = vsel %vm1653, %v1309, %v1717
        %v1782 = vsel %vm1654, %v1407, %v1718
        %v1783 = vsel %vm1655, %v1505, %v1719
        %v1784 = vsel %vm1656, %v1603, %v1720
        %v1785 = vsel %vm1657, %v1312, %v1721
        %v1786 = vsel %vm1658, %v1410, %v1722
        %v1787 = vsel %vm1659, %v1508, %v1723
        %v1788 = vsel %vm1660, %v1606, %v1724
        %v1789 = vsel %vm1661, %v1314, %v1725
        %v1790 = vsel %vm1662, %v1412, %v1726
        %v1791 = vsel %vm1663, %v1510, %v1727
        %v1792 = vsel %vm1664, %v1608, %v1728
        %v1793 = vsel %vm1665, %v1317, %v1729
        %v1794 = vsel %vm1666, %v1415, %v1730
        %v1795 = vsel %vm1667, %v1513, %v1731
        %v1796 = vsel %vm1668, %v1611, %v1732
        %v1797 = vsel %vm1669, %v1319, %v1733
        %v1798 = vsel %vm1670, %v1417, %v1734
        %v1799 = vsel %vm1671, %v1515, %v1735
        %v1800 = vsel %vm1672, %v1613, %v1736
        %v1801 = vsel %vm1673, %v1322, %v1737
        %v1802 = vsel %vm1674, %v1420, %v1738
        %v1803 = vsel %vm1675, %v1518, %v1739
        %v1804 = vsel %vm1676, %v1616, %v1740
        %v1805 = vsel %vm1677, %v1324, %v1741
        %v1806 = vsel %vm1678, %v1422, %v1742
        %v1807 = vsel %vm1679, %v1520, %v1743
        %v1808 = vsel %vm1680, %v1618, %v1744
        %v1809 = vsel %vm1681, %v1327, %v1745
        %v1810 = vsel %vm1682, %v1425, %v1746
        %v1811 = vsel %vm1683, %v1523, %v1747
        %v1812 = vsel %vm1684, %v1621, %v1748
        %v1813 = vsel %vm1685, %v1329, %v1749
        %v1814 = vsel %vm1686, %v1427, %v1750
        %v1815 = vsel %vm1687, %v1525, %v1751
        %v1816 = vsel %vm1688, %v1623, %v1752
        %v1817 = vpack.c.bf16 %v1757, %v1753
        %v1818 = vpack.c.bf16 %v1758, %v1754
        %v1819 = vpack.c.bf16 %v1759, %v1755
        %v1820 = vpack.c.bf16 %v1760, %v1756
        %v1821 = vpack.c.bf16 %v1765, %v1761
        %v1822 = vpack.c.bf16 %v1766, %v1762
        %v1823 = vpack.c.bf16 %v1767, %v1763
        %v1824 = vpack.c.bf16 %v1768, %v1764
        %v1825 = vpack.c.bf16 %v1773, %v1769
        %v1826 = vpack.c.bf16 %v1774, %v1770
        %v1827 = vpack.c.bf16 %v1775, %v1771
        %v1828 = vpack.c.bf16 %v1776, %v1772
        %v1829 = vpack.c.bf16 %v1781, %v1777
        %v1830 = vpack.c.bf16 %v1782, %v1778
        %v1831 = vpack.c.bf16 %v1783, %v1779
        %v1832 = vpack.c.bf16 %v1784, %v1780
        %v1833 = vpack.c.bf16 %v1789, %v1785
        %v1834 = vpack.c.bf16 %v1790, %v1786
        %v1835 = vpack.c.bf16 %v1791, %v1787
        %v1836 = vpack.c.bf16 %v1792, %v1788
        %v1837 = vpack.c.bf16 %v1797, %v1793
        %v1838 = vpack.c.bf16 %v1798, %v1794
        %v1839 = vpack.c.bf16 %v1799, %v1795
        %v1840 = vpack.c.bf16 %v1800, %v1796
        %v1841 = vpack.c.bf16 %v1805, %v1801
        %v1842 = vpack.c.bf16 %v1806, %v1802
        %v1843 = vpack.c.bf16 %v1807, %v1803
        %v1844 = vpack.c.bf16 %v1808, %v1804
        %v1845 = vpack.c.bf16 %v1813, %v1809
        %v1846 = vpack.c.bf16 %v1814, %v1810
        %v1847 = vpack.c.bf16 %v1815, %v1811
        %v1848 = vpack.c.bf16 %v1816, %v1812
        %v1849 = vld [vmem:[#allocation10] sm:$0xf]
        %v1850 = vld [vmem:[#allocation10 + $0x4] sm:$0xf]
        %v1851 = vld [vmem:[#allocation10 + $0x8] sm:$0xf]
        %v1852 = vld [vmem:[#allocation10 + $0xc] sm:$0xf]
        %v1853 = vld [vmem:[#allocation10 + $0x10] sm:$0xf]
        %v1854 = vld [vmem:[#allocation10 + $0x14] sm:$0xf]
        %v1855 = vld [vmem:[#allocation10 + $0x18] sm:$0xf]
        %v1856 = vld [vmem:[#allocation10 + $0x1c] sm:$0xf]
        %v1857 = vld [vmem:[#allocation10 + $0x20] sm:$0xf]
        %v1858 = vld [vmem:[#allocation10 + $0x24] sm:$0xf]
        %v1859 = vld [vmem:[#allocation10 + $0x28] sm:$0xf]
        %v1860 = vld [vmem:[#allocation10 + $0x2c] sm:$0xf]
        %v1861 = vld [vmem:[#allocation10 + $0x30] sm:$0xf]
        %v1862 = vld [vmem:[#allocation10 + $0x34] sm:$0xf]
        %v1863 = vld [vmem:[#allocation10 + $0x38] sm:$0xf]
        %v1864 = vld [vmem:[#allocation10 + $0x3c] sm:$0xf]
        %v1865 = vld [vmem:[#allocation10 + $0x40] sm:$0xf]
        %v1866 = vld [vmem:[#allocation10 + $0x44] sm:$0xf]
        %v1867 = vld [vmem:[#allocation10 + $0x48] sm:$0xf]
        %v1868 = vld [vmem:[#allocation10 + $0x4c] sm:$0xf]
        %v1869 = vld [vmem:[#allocation10 + $0x50] sm:$0xf]
        %v1870 = vld [vmem:[#allocation10 + $0x54] sm:$0xf]
        %v1871 = vld [vmem:[#allocation10 + $0x58] sm:$0xf]
        %v1872 = vld [vmem:[#allocation10 + $0x5c] sm:$0xf]
        %v1873 = vld [vmem:[#allocation10 + $0x60] sm:$0xf]
        %v1874 = vld [vmem:[#allocation10 + $0x64] sm:$0xf]
        %v1875 = vld [vmem:[#allocation10 + $0x68] sm:$0xf]
        %v1876 = vld [vmem:[#allocation10 + $0x6c] sm:$0xf]
        %v1877 = vld [vmem:[#allocation10 + $0x70] sm:$0xf]
        %v1878 = vld [vmem:[#allocation10 + $0x74] sm:$0xf]
        %v1879 = vld [vmem:[#allocation10 + $0x78] sm:$0xf]
        %v1880 = vld [vmem:[#allocation10 + $0x7c] sm:$0xf]
        %v1881 = vld [vmem:[#allocation10 + $0x80] sm:$0xf]
        %v1882 = vld [vmem:[#allocation10 + $0x84] sm:$0xf]
        %v1883 = vld [vmem:[#allocation10 + $0x88] sm:$0xf]
        %v1884 = vld [vmem:[#allocation10 + $0x8c] sm:$0xf]
        %v1885 = vld [vmem:[#allocation10 + $0x90] sm:$0xf]
        %v1886 = vld [vmem:[#allocation10 + $0x94] sm:$0xf]
        %v1887 = vld [vmem:[#allocation10 + $0x98] sm:$0xf]
        %v1888 = vld [vmem:[#allocation10 + $0x9c] sm:$0xf]
        %v1889 = vld [vmem:[#allocation10 + $0xa0] sm:$0xf]
        %v1890 = vld [vmem:[#allocation10 + $0xa4] sm:$0xf]
        %v1891 = vld [vmem:[#allocation10 + $0xa8] sm:$0xf]
        %v1892 = vld [vmem:[#allocation10 + $0xac] sm:$0xf]
        %v1893 = vld [vmem:[#allocation10 + $0xb0] sm:$0xf]
        %v1894 = vld [vmem:[#allocation10 + $0xb4] sm:$0xf]
        %v1895 = vld [vmem:[#allocation10 + $0xb8] sm:$0xf]
        %v1896 = vld [vmem:[#allocation10 + $0xbc] sm:$0xf]
        %v1897 = vld [vmem:[#allocation10 + $0xc0] sm:$0xf]
        %v1898 = vld [vmem:[#allocation10 + $0xc4] sm:$0xf]
        %v1899 = vld [vmem:[#allocation10 + $0xc8] sm:$0xf]
        %v1900 = vld [vmem:[#allocation10 + $0xcc] sm:$0xf]
        %v1901 = vld [vmem:[#allocation10 + $0xd0] sm:$0xf]
        %v1902 = vld [vmem:[#allocation10 + $0xd4] sm:$0xf]
        %v1903 = vld [vmem:[#allocation10 + $0xd8] sm:$0xf]
        %v1904 = vld [vmem:[#allocation10 + $0xdc] sm:$0xf]
        %v1905 = vld [vmem:[#allocation10 + $0xe0] sm:$0xf]
        %v1906 = vld [vmem:[#allocation10 + $0xe4] sm:$0xf]
        %v1907 = vld [vmem:[#allocation10 + $0xe8] sm:$0xf]
        %v1908 = vld [vmem:[#allocation10 + $0xec] sm:$0xf]
        %v1909 = vld [vmem:[#allocation10 + $0xf0] sm:$0xf]
        %v1910 = vld [vmem:[#allocation10 + $0xf4] sm:$0xf]
        %v1911 = vld [vmem:[#allocation10 + $0xf8] sm:$0xf]
        %v1912 = vld [vmem:[#allocation10 + $0xfc] sm:$0xf]
        %v1913 = vld [vmem:[%s5] sm:$0x1]
        %v1915 = vperm.slane %v1913, 0
        %v1981 = vunpack.c.l.b16 %v1849
        %v1982 = vunpack.c.l.b16 %v1850
        %v1983 = vunpack.c.l.b16 %v1851
        %v1984 = vunpack.c.l.b16 %v1852
        %v1985 = vunpack.c.l.b16 %v1853
        %v1986 = vunpack.c.l.b16 %v1854
        %v1987 = vunpack.c.l.b16 %v1855
        %v1988 = vunpack.c.l.b16 %v1856
        %v1989 = vunpack.c.l.b16 %v1857
        %v1990 = vunpack.c.l.b16 %v1858
        %v1991 = vunpack.c.l.b16 %v1859
        %v1992 = vunpack.c.l.b16 %v1860
        %v1993 = vunpack.c.l.b16 %v1861
        %v1994 = vunpack.c.l.b16 %v1862
        %v1995 = vunpack.c.l.b16 %v1863
        %v1996 = vunpack.c.l.b16 %v1864
        %v1997 = vunpack.c.l.b16 %v1865
        %v1998 = vunpack.c.l.b16 %v1866
        %v1999 = vunpack.c.l.b16 %v1867
        %v2000 = vunpack.c.l.b16 %v1868
        %v2001 = vunpack.c.l.b16 %v1869
        %v2002 = vunpack.c.l.b16 %v1870
        %v2003 = vunpack.c.l.b16 %v1871
        %v2004 = vunpack.c.l.b16 %v1872
        %v2005 = vunpack.c.l.b16 %v1873
        %v2006 = vunpack.c.l.b16 %v1874
        %v2007 = vunpack.c.l.b16 %v1875
        %v2008 = vunpack.c.l.b16 %v1876
        %v2009 = vunpack.c.l.b16 %v1877
        %v2010 = vunpack.c.l.b16 %v1878
        %v2011 = vunpack.c.l.b16 %v1879
        %v2012 = vunpack.c.l.b16 %v1880
        %v2013 = vunpack.c.l.b16 %v1881
        %v2014 = vunpack.c.l.b16 %v1882
        %v2015 = vunpack.c.l.b16 %v1883
        %v2016 = vunpack.c.l.b16 %v1884
        %v2017 = vunpack.c.l.b16 %v1885
        %v2018 = vunpack.c.l.b16 %v1886
        %v2019 = vunpack.c.l.b16 %v1887
        %v2020 = vunpack.c.l.b16 %v1888
        %v2021 = vunpack.c.l.b16 %v1889
        %v2022 = vunpack.c.l.b16 %v1890
        %v2023 = vunpack.c.l.b16 %v1891
        %v2024 = vunpack.c.l.b16 %v1892
        %v2025 = vunpack.c.l.b16 %v1893
        %v2026 = vunpack.c.l.b16 %v1894
        %v2027 = vunpack.c.l.b16 %v1895
        %v2028 = vunpack.c.l.b16 %v1896
        %v2029 = vunpack.c.l.b16 %v1897
        %v2030 = vunpack.c.l.b16 %v1898
        %v2031 = vunpack.c.l.b16 %v1899
        %v2032 = vunpack.c.l.b16 %v1900
        %v2033 = vunpack.c.l.b16 %v1901
        %v2034 = vunpack.c.l.b16 %v1902
        %v2035 = vunpack.c.l.b16 %v1903
        %v2036 = vunpack.c.l.b16 %v1904
        %v2037 = vunpack.c.l.b16 %v1905
        %v2038 = vunpack.c.l.b16 %v1906
        %v2039 = vunpack.c.l.b16 %v1907
        %v2040 = vunpack.c.l.b16 %v1908
        %v2041 = vunpack.c.l.b16 %v1909
        %v2042 = vunpack.c.l.b16 %v1910
        %v2043 = vunpack.c.l.b16 %v1911
        %v2044 = vunpack.c.l.b16 %v1912
        %v2045 = vpack.c.b16 %v1982, %v1981
        %v2046 = vpack.c.b16 %v1984, %v1983
        %v2047 = vpack.c.b16 %v1986, %v1985
        %v2048 = vpack.c.b16 %v1988, %v1987
        %v2049 = vpack.c.b16 %v1990, %v1989
        %v2050 = vpack.c.b16 %v1992, %v1991
        %v2051 = vpack.c.b16 %v1994, %v1993
        %v2052 = vpack.c.b16 %v1996, %v1995
        %v2053 = vpack.c.b16 %v1998, %v1997
        %v2054 = vpack.c.b16 %v2000, %v1999
        %v2055 = vpack.c.b16 %v2002, %v2001
        %v2056 = vpack.c.b16 %v2004, %v2003
        %v2057 = vpack.c.b16 %v2006, %v2005
        %v2058 = vpack.c.b16 %v2008, %v2007
        %v2059 = vpack.c.b16 %v2010, %v2009
        %v2060 = vpack.c.b16 %v2012, %v2011
        %v2061 = vpack.c.b16 %v2014, %v2013
        %v2062 = vpack.c.b16 %v2016, %v2015
        %v2063 = vpack.c.b16 %v2018, %v2017
        %v2064 = vpack.c.b16 %v2020, %v2019
        %v2065 = vpack.c.b16 %v2022, %v2021
        %v2066 = vpack.c.b16 %v2024, %v2023
        %v2067 = vpack.c.b16 %v2026, %v2025
        %v2068 = vpack.c.b16 %v2028, %v2027
        %v2069 = vpack.c.b16 %v2030, %v2029
        %v2070 = vpack.c.b16 %v2032, %v2031
        %v2071 = vpack.c.b16 %v2034, %v2033
        %v2072 = vpack.c.b16 %v2036, %v2035
        %v2073 = vpack.c.b16 %v2038, %v2037
        %v2074 = vpack.c.b16 %v2040, %v2039
        %v2075 = vpack.c.b16 %v2042, %v2041
        %v2076 = vpack.c.b16 %v2044, %v2043
        %2109 = vmatpush.bf16.msra.mxu0 %v2052
        %2110 = vmatpush.bf16.msra.mxu0 %v2051
        %2111 = vmatpush.bf16.msra.mxu0 %v2050
        %2112 = vmatpush.bf16.msra.mxu0 %v2049
        %2113 = vmatpush.bf16.msra.mxu0 %v2048
        %2114 = vmatpush.bf16.msra.mxu0 %v2047
        %2115 = vmatpush.bf16.msra.mxu0 %v2046
        %2116 = vmatpush.bf16.msra.mxu0 %v2045
        %2117 = vmatmul.bf16.gmra.mxu0 %v1817
        %v2118 = vpop.f32.mrf.mxu0
        %v2119 = vadd.f32 %v1915, %v2118
        %v2120 = vpop.f32.mrf.mxu0
        %v2121 = vadd.f32 %v1915, %v2120
        %2122 = vmatmul.bf16.gmra.mxu0 %v1821
        %v2123 = vpop.f32.mrf.mxu0
        %v2124 = vadd.f32 %v1915, %v2123
        %v2125 = vpop.f32.mrf.mxu0
        %v2126 = vadd.f32 %v1915, %v2125
        %2127 = vmatmul.bf16.gmra.mxu0 %v1825
        %v2128 = vpop.f32.mrf.mxu0
        %v2129 = vadd.f32 %v1915, %v2128
        %v2130 = vpop.f32.mrf.mxu0
        %v2131 = vadd.f32 %v1915, %v2130
        %2132 = vmatmul.bf16.gmra.mxu0 %v1829
        %v2133 = vpop.f32.mrf.mxu0
        %v2134 = vadd.f32 %v1915, %v2133
        %v2135 = vpop.f32.mrf.mxu0
        %v2136 = vadd.f32 %v1915, %v2135
        %2137 = vmatmul.bf16.gmra.mxu0 %v1833
        %v2138 = vpop.f32.mrf.mxu0
        %v2139 = vadd.f32 %v1915, %v2138
        %v2140 = vpop.f32.mrf.mxu0
        %v2141 = vadd.f32 %v1915, %v2140
        %2142 = vmatmul.bf16.gmra.mxu0 %v1837
        %v2143 = vpop.f32.mrf.mxu0
        %v2144 = vadd.f32 %v1915, %v2143
        %v2145 = vpop.f32.mrf.mxu0
        %v2146 = vadd.f32 %v1915, %v2145
        %2147 = vmatmul.bf16.gmra.mxu0 %v1841
        %v2148 = vpop.f32.mrf.mxu0
        %v2149 = vadd.f32 %v1915, %v2148
        %v2150 = vpop.f32.mrf.mxu0
        %v2151 = vadd.f32 %v1915, %v2150
        %2152 = vmatmul.bf16.gmra.mxu0 %v1845
        %v2153 = vpop.f32.mrf.mxu0
        %v2154 = vadd.f32 %v1915, %v2153
        %v2155 = vpop.f32.mrf.mxu0
        %v2156 = vadd.f32 %v1915, %v2155
        %2157 = vdwg.mxu0
        %2158 = vmatpush.bf16.msra.mxu0 %v2060
        %2159 = vmatpush.bf16.msra.mxu0 %v2059
        %2160 = vmatpush.bf16.msra.mxu0 %v2058
        %2161 = vmatpush.bf16.msra.mxu0 %v2057
        %2162 = vmatpush.bf16.msra.mxu0 %v2056
        %2163 = vmatpush.bf16.msra.mxu0 %v2055
        %2164 = vmatpush.bf16.msra.mxu0 %v2054
        %2165 = vmatpush.bf16.msra.mxu0 %v2053
        %2166 = vmatmul.bf16.gmra.mxu0 %v1818
        %v2167 = vpop.f32.mrf.mxu0
        %v2168 = vadd.f32 %v2119, %v2167
        %v2169 = vpop.f32.mrf.mxu0
        %v2170 = vadd.f32 %v2121, %v2169
        %2171 = vmatmul.bf16.gmra.mxu0 %v1822
        %v2172 = vpop.f32.mrf.mxu0
        %v2173 = vadd.f32 %v2124, %v2172
        %v2174 = vpop.f32.mrf.mxu0
        %v2175 = vadd.f32 %v2126, %v2174
        %2176 = vmatmul.bf16.gmra.mxu0 %v1826
        %v2177 = vpop.f32.mrf.mxu0
        %v2178 = vadd.f32 %v2129, %v2177
        %v2179 = vpop.f32.mrf.mxu0
        %v2180 = vadd.f32 %v2131, %v2179
        %2181 = vmatmul.bf16.gmra.mxu0 %v1830
        %v2182 = vpop.f32.mrf.mxu0
        %v2183 = vadd.f32 %v2134, %v2182
        %v2184 = vpop.f32.mrf.mxu0
        %v2185 = vadd.f32 %v2136, %v2184
        %2186 = vmatmul.bf16.gmra.mxu0 %v1834
        %v2187 = vpop.f32.mrf.mxu0
        %v2188 = vadd.f32 %v2139, %v2187
        %v2189 = vpop.f32.mrf.mxu0
        %v2190 = vadd.f32 %v2141, %v2189
        %2191 = vmatmul.bf16.gmra.mxu0 %v1838
        %v2192 = vpop.f32.mrf.mxu0
        %v2193 = vadd.f32 %v2144, %v2192
        %v2194 = vpop.f32.mrf.mxu0
        %v2195 = vadd.f32 %v2146, %v2194
        %2196 = vmatmul.bf16.gmra.mxu0 %v1842
        %v2197 = vpop.f32.mrf.mxu0
        %v2198 = vadd.f32 %v2149, %v2197
        %v2199 = vpop.f32.mrf.mxu0
        %v2200 = vadd.f32 %v2151, %v2199
        %2201 = vmatmul.bf16.gmra.mxu0 %v1846
        %v2202 = vpop.f32.mrf.mxu0
        %v2203 = vadd.f32 %v2154, %v2202
        %v2204 = vpop.f32.mrf.mxu0
        %v2205 = vadd.f32 %v2156, %v2204
        %2206 = vdwg.mxu0
        %2207 = vmatpush.bf16.msra.mxu0 %v2068
        %2208 = vmatpush.bf16.msra.mxu0 %v2067
        %2209 = vmatpush.bf16.msra.mxu0 %v2066
        %2210 = vmatpush.bf16.msra.mxu0 %v2065
        %2211 = vmatpush.bf16.msra.mxu0 %v2064
        %2212 = vmatpush.bf16.msra.mxu0 %v2063
        %2213 = vmatpush.bf16.msra.mxu0 %v2062
        %2214 = vmatpush.bf16.msra.mxu0 %v2061
        %2215 = vmatmul.bf16.gmra.mxu0 %v1819
        %v2216 = vpop.f32.mrf.mxu0
        %v2217 = vadd.f32 %v2168, %v2216
        %v2218 = vpop.f32.mrf.mxu0
        %v2219 = vadd.f32 %v2170, %v2218
        %2220 = vmatmul.bf16.gmra.mxu0 %v1823
        %v2221 = vpop.f32.mrf.mxu0
        %v2222 = vadd.f32 %v2173, %v2221
        %v2223 = vpop.f32.mrf.mxu0
        %v2224 = vadd.f32 %v2175, %v2223
        %2225 = vmatmul.bf16.gmra.mxu0 %v1827
        %v2226 = vpop.f32.mrf.mxu0
        %v2227 = vadd.f32 %v2178, %v2226
        %v2228 = vpop.f32.mrf.mxu0
        %v2229 = vadd.f32 %v2180, %v2228
        %2230 = vmatmul.bf16.gmra.mxu0 %v1831
        %v2231 = vpop.f32.mrf.mxu0
        %v2232 = vadd.f32 %v2183, %v2231
        %v2233 = vpop.f32.mrf.mxu0
        %v2234 = vadd.f32 %v2185, %v2233
        %2235 = vmatmul.bf16.gmra.mxu0 %v1835
        %v2236 = vpop.f32.mrf.mxu0
        %v2237 = vadd.f32 %v2188, %v2236
        %v2238 = vpop.f32.mrf.mxu0
        %v2239 = vadd.f32 %v2190, %v2238
        %2240 = vmatmul.bf16.gmra.mxu0 %v1839
        %v2241 = vpop.f32.mrf.mxu0
        %v2242 = vadd.f32 %v2193, %v2241
        %v2243 = vpop.f32.mrf.mxu0
        %v2244 = vadd.f32 %v2195, %v2243
        %2245 = vmatmul.bf16.gmra.mxu0 %v1843
        %v2246 = vpop.f32.mrf.mxu0
        %v2247 = vadd.f32 %v2198, %v2246
        %v2248 = vpop.f32.mrf.mxu0
        %v2249 = vadd.f32 %v2200, %v2248
        %2250 = vmatmul.bf16.gmra.mxu0 %v1847
        %v2251 = vpop.f32.mrf.mxu0
        %v2252 = vadd.f32 %v2203, %v2251
        %v2253 = vpop.f32.mrf.mxu0
        %v2254 = vadd.f32 %v2205, %v2253
        %2255 = vdwg.mxu0
        %2256 = vmatpush.bf16.msra.mxu0 %v2076
        %2257 = vmatpush.bf16.msra.mxu0 %v2075
        %2258 = vmatpush.bf16.msra.mxu0 %v2074
        %2259 = vmatpush.bf16.msra.mxu0 %v2073
        %2260 = vmatpush.bf16.msra.mxu0 %v2072
        %2261 = vmatpush.bf16.msra.mxu0 %v2071
        %2262 = vmatpush.bf16.msra.mxu0 %v2070
        %2263 = vmatpush.bf16.msra.mxu0 %v2069
        %2264 = vmatmul.bf16.gmra.mxu0 %v1820
        %v2265 = vpop.f32.mrf.mxu0
        %v2266 = vadd.f32 %v2217, %v2265
        %v2267 = vpop.f32.mrf.mxu0
        %v2268 = vadd.f32 %v2219, %v2267
        %2269 = vmatmul.bf16.gmra.mxu0 %v1824
        %v2270 = vpop.f32.mrf.mxu0
        %v2271 = vadd.f32 %v2222, %v2270
        %v2272 = vpop.f32.mrf.mxu0
        %v2273 = vadd.f32 %v2224, %v2272
        %2274 = vmatmul.bf16.gmra.mxu0 %v1828
        %v2275 = vpop.f32.mrf.mxu0
        %v2276 = vadd.f32 %v2227, %v2275
        %v2277 = vpop.f32.mrf.mxu0
        %v2278 = vadd.f32 %v2229, %v2277
        %2279 = vmatmul.bf16.gmra.mxu0 %v1832
        %v2280 = vpop.f32.mrf.mxu0
        %v2281 = vadd.f32 %v2232, %v2280
        %v2282 = vpop.f32.mrf.mxu0
        %v2283 = vadd.f32 %v2234, %v2282
        %2284 = vmatmul.bf16.gmra.mxu0 %v1836
        %v2285 = vpop.f32.mrf.mxu0
        %v2286 = vadd.f32 %v2237, %v2285
        %v2287 = vpop.f32.mrf.mxu0
        %v2288 = vadd.f32 %v2239, %v2287
        %2289 = vmatmul.bf16.gmra.mxu0 %v1840
        %v2290 = vpop.f32.mrf.mxu0
        %v2291 = vadd.f32 %v2242, %v2290
        %v2292 = vpop.f32.mrf.mxu0
        %v2293 = vadd.f32 %v2244, %v2292
        %2294 = vmatmul.bf16.gmra.mxu0 %v1844
        %v2295 = vpop.f32.mrf.mxu0
        %v2296 = vadd.f32 %v2247, %v2295
        %v2297 = vpop.f32.mrf.mxu0
        %v2298 = vadd.f32 %v2249, %v2297
        %2299 = vmatmul.bf16.gmra.mxu0 %v1848
        %v2300 = vpop.f32.mrf.mxu0
        %v2301 = vadd.f32 %v2252, %v2300
        %v2302 = vpop.f32.mrf.mxu0
        %v2303 = vadd.f32 %v2254, %v2302
        %2304 = vdwg.mxu0
        %vm2305 = vcmp.gt.f32.partialorder %v2266, 0.0
        %vm2306 = vcmp.gt.f32.partialorder %v2268, 0.0
        %vm2307 = vcmp.gt.f32.partialorder %v2271, 0.0
        %vm2308 = vcmp.gt.f32.partialorder %v2273, 0.0
        %vm2309 = vcmp.gt.f32.partialorder %v2276, 0.0
        %vm2310 = vcmp.gt.f32.partialorder %v2278, 0.0
        %vm2311 = vcmp.gt.f32.partialorder %v2281, 0.0
        %vm2312 = vcmp.gt.f32.partialorder %v2283, 0.0
        %vm2313 = vcmp.gt.f32.partialorder %v2286, 0.0
        %vm2314 = vcmp.gt.f32.partialorder %v2288, 0.0
        %vm2315 = vcmp.gt.f32.partialorder %v2291, 0.0
        %vm2316 = vcmp.gt.f32.partialorder %v2293, 0.0
        %vm2317 = vcmp.gt.f32.partialorder %v2296, 0.0
        %vm2318 = vcmp.gt.f32.partialorder %v2298, 0.0
        %vm2319 = vcmp.gt.f32.partialorder %v2301, 0.0
        %vm2320 = vcmp.gt.f32.partialorder %v2303, 0.0
        %v2321 = vmul.f32 %v2266, 0.01
        %v2322 = vmul.f32 %v2268, 0.01
        %v2323 = vmul.f32 %v2271, 0.01
        %v2324 = vmul.f32 %v2273, 0.01
        %v2325 = vmul.f32 %v2276, 0.01
        %v2326 = vmul.f32 %v2278, 0.01
        %v2327 = vmul.f32 %v2281, 0.01
        %v2328 = vmul.f32 %v2283, 0.01
        %v2329 = vmul.f32 %v2286, 0.01
        %v2330 = vmul.f32 %v2288, 0.01
        %v2331 = vmul.f32 %v2291, 0.01
        %v2332 = vmul.f32 %v2293, 0.01
        %v2333 = vmul.f32 %v2296, 0.01
        %v2334 = vmul.f32 %v2298, 0.01
        %v2335 = vmul.f32 %v2301, 0.01
        %v2336 = vmul.f32 %v2303, 0.01
        %v2337 = vsel %vm2305, %v2266, %v2321
        %v2338 = vsel %vm2306, %v2268, %v2322
        %v2339 = vsel %vm2307, %v2271, %v2323
        %v2340 = vsel %vm2308, %v2273, %v2324
        %v2341 = vsel %vm2309, %v2276, %v2325
        %v2342 = vsel %vm2310, %v2278, %v2326
        %v2343 = vsel %vm2311, %v2281, %v2327
        %v2344 = vsel %vm2312, %v2283, %v2328
        %v2345 = vsel %vm2313, %v2286, %v2329
        %v2346 = vsel %vm2314, %v2288, %v2330
        %v2347 = vsel %vm2315, %v2291, %v2331
        %v2348 = vsel %vm2316, %v2293, %v2332
        %v2349 = vsel %vm2317, %v2296, %v2333
        %v2350 = vsel %vm2318, %v2298, %v2334
        %v2351 = vsel %vm2319, %v2301, %v2335
        %v2352 = vsel %vm2320, %v2303, %v2336
        %v2353 = vpack.c.bf16 %v2337, %v2337
        %v2354 = vpack.c.bf16 %v2338, %v2338
        %v2355 = vpack.c.bf16 %v2339, %v2339
        %v2356 = vpack.c.bf16 %v2340, %v2340
        %v2357 = vpack.c.bf16 %v2341, %v2341
        %v2358 = vpack.c.bf16 %v2342, %v2342
        %v2359 = vpack.c.bf16 %v2343, %v2343
        %v2360 = vpack.c.bf16 %v2344, %v2344
        %v2361 = vpack.c.bf16 %v2345, %v2345
        %v2362 = vpack.c.bf16 %v2346, %v2346
        %v2363 = vpack.c.bf16 %v2347, %v2347
        %v2364 = vpack.c.bf16 %v2348, %v2348
        %v2365 = vpack.c.bf16 %v2349, %v2349
        %v2366 = vpack.c.bf16 %v2350, %v2350
        %v2367 = vpack.c.bf16 %v2351, %v2351
        %v2368 = vpack.c.bf16 %v2352, %v2352
        %2369 = vst [vmem:[%s336] sm:$0xf] %v2353
        %2370 = vst [vmem:[%s336 + $0x4] sm:$0xf] %v2354
        %2371 = vst [vmem:[%s336 + $0x8] sm:$0xf] %v2355
        %2372 = vst [vmem:[%s336 + $0xc] sm:$0xf] %v2356
        %2373 = vst [vmem:[%s336 + $0x10] sm:$0xf] %v2357
        %2374 = vst [vmem:[%s336 + $0x14] sm:$0xf] %v2358
        %2375 = vst [vmem:[%s336 + $0x18] sm:$0xf] %v2359
        %2376 = vst [vmem:[%s336 + $0x1c] sm:$0xf] %v2360
        %2377 = vst [vmem:[%s336 + $0x20] sm:$0xf] %v2361
        %2378 = vst [vmem:[%s336 + $0x24] sm:$0xf] %v2362
        %2379 = vst [vmem:[%s336 + $0x28] sm:$0xf] %v2363
        %2380 = vst [vmem:[%s336 + $0x2c] sm:$0xf] %v2364
        %2381 = vst [vmem:[%s336 + $0x30] sm:$0xf] %v2365
        %2382 = vst [vmem:[%s336 + $0x34] sm:$0xf] %v2366
        %2383 = vst [vmem:[%s336 + $0x38] sm:$0xf] %v2367
        %2384 = vst [vmem:[%s336 + $0x3c] sm:$0xf] %v2368
        %s2385 = sand.u32 %s164, 1
        %s2386 = scalar_lea.sflag [#allocation4], %s2385
        %s2387 = sand.u32 %s164, 1
        %s2388 = smul.addr %s2387, 64
        %s2389 = scalar_lea.vmem [#allocation11], %s2388
        // Predicated region
        $region65: #{tpu_custom_call.1} parent=43 // pred_check
          %p2390 = pneg %p174
        $region66: #{tpu_custom_call.1} parent=43 // pred_check_branch
          %2392 = sbr.rel (%p2390) target = $region68
        $region67: #{tpu_custom_call.1} parent=43 // pred_region
          %s2393 = smul.u32 16, %s25
          %2395 = vsyncadd %s2386, 0
          %s2396 = smul.addr %s2393, 4
          %s2397 = scalar_lea.hbm %s6, %s2396
          %s2398 = sshll.u32 %s2389, 4
          %s2399 = int_to_ptr.vmem [resolvable:$true] %s2398
          %s2400 = sshll.u32 %s2397, 4
          %s2401 = int_to_ptr.hbm [resolvable:$true] %s2400
          %2406 = dma.vmem_to_hbm [thread:$0]  %s2399, 1024, %s2401, %s2386, 64, 64, 4
        $region68: #{tpu_custom_call.1} parent=43 // pred_fallthru
          _
      $region44: #{tpu_custom_call.1} parent=5 // pred_fallthru
        _
      %p2407 = scmp.le.s32.totalorder 2, %s20
      // Predicated region
      $region69: #{tpu_custom_call.1} parent=5 // pred_check
        %p2408 = pneg %p2407
      $region70: #{tpu_custom_call.1} parent=5 // pred_check_branch
        %2410 = sbr.rel (%p2408) target = $region72
      $region71: #{tpu_custom_call.1} parent=5 // pred_region
        %s2411 = ssub.s32 %s20, 2
        // Predicated region
        $region73: #{tpu_custom_call.1} parent=71 // pred_check
          %p2412 = pneg %p180
        $region74: #{tpu_custom_call.1} parent=71 // pred_check_branch
          %2414 = sbr.rel (%p2412) target = $region76
        $region75: #{tpu_custom_call.1} parent=71 // pred_region
          %s2415 = sand.u32 %s165, 1
          %s2416 = scalar_lea.sflag [#allocation4], %s2415
          %s2417 = sand.u32 %s165, 1
          %s2418 = smul.addr %s2417, 64
          %s2419 = scalar_lea.vmem [#allocation11], %s2418
          %2421 = dma.done %s2416, 1024
        $region76: #{tpu_custom_call.1} parent=71 // pred_fallthru
          _
      $region72: #{tpu_custom_call.1} parent=5 // pred_fallthru
        _
    $region6: #{tpu_custom_call.1} parent=1 // loop_footer
      %s24 = sadd.s32 1, %s20
    $region7: #{tpu_custom_call.1} parent=1 // loop_footer_branch
      %19 = sbr.rel target = $region3
    $region8: #{tpu_custom_call.1} parent=1 // loop_exit
      _
    %2422 = vsyncpa [#allocation3], 1
    %s2423 = scalar_lea.sflag [#allocation3], 1
    %2424 = vsyncpa %s2423, 1
    %2425 = vsyncpa [#allocation6], 1
    %2426 = vsyncpa [#allocation9], 1
    %2427 = vsyncpa [#allocation4], 1
    %s2428 = scalar_lea.sflag [#allocation4], 1
    %2429 = vsyncpa %s2428, 1

</llo_original>
